<compile_context>
chip_gen: v7x
topology: tpu7x:2x2x1
jax: 0.10.0
libtpu: 0.0.40
codegen_flags: <defaults>
</compile_context>

<pallas_src>
import math

import jax
import jax.numpy as jnp
from jax import lax
from jax.experimental import pallas as pl
from jax.experimental.pallas import tpu as pltpu

_MIN_VMEM_LIMIT = 32 * 1024 * 1024    # default scoped limit, always safe to request
_MAX_VMEM_LIMIT = 48 * 1024 * 1024    # headroom on v7x (64 MiB physical VMEM / TC)
_TILE_VMEM_BUDGET = 40 * 1024 * 1024  # budget for double-buffered tile footprint


def _pick_tile(dim, candidates, align):
    """Largest candidate evenly dividing `dim`; else the largest multiple of
    `align` (<= max candidate) dividing `dim`; else the full extent (always a
    legal Pallas block shape, only hit for small dims)."""
    for c in candidates:
        if dim >= c and dim % c == 0:
            return c
    cap = min(dim, max(candidates))
    t = (cap // align) * align
    while t >= align:
        if dim % t == 0:
            return t
        t -= align
    return dim


def _clamp_vmem(nbytes):
    return int(min(max(nbytes, _MIN_VMEM_LIMIT), _MAX_VMEM_LIMIT))


# ----------------------------------------------------------------------------
# Kernel 1: tiled dense linear layer  y = x @ W_t + b
#   x: (M, K) compute dtype, W_t: (K, N) pre-transposed compute dtype,
#   b: (1, N) f32.  Accumulation in f32; acc is bias-initialized at k==0 so the
#   finalize step is a pure cast.
# ----------------------------------------------------------------------------
def _matmul_bias_kernel(x_ref, w_ref, b_ref, o_ref, acc_ref):
    @pl.when(pl.program_id(2) == 0)
    def _init():
        acc_ref[...] = jnp.broadcast_to(b_ref[...].astype(jnp.float32),
                                        acc_ref.shape)

    acc_ref[...] += jnp.dot(x_ref[...], w_ref[...],
                            preferred_element_type=jnp.float32)

    @pl.when(pl.program_id(2) == pl.num_programs(2) - 1)
    def _finalize():
        o_ref[...] = acc_ref[...].astype(o_ref.dtype)


def _linear_footprint(tm, tn, tk, in_isize, out_isize):
    # double-buffered x, w, bias, out tiles + f32 accumulator scratch
    return (2 * (tm * tk + tk * tn) * in_isize
            + 2 * tn * 4
            + 2 * tm * tn * out_isize
            + tm * tn * 4)


def linear(x2d, w_t, b):
    """x2d: (M, K), w_t: (K, N) pre-transposed, b: (N,) f32 -> (M, N)."""
    M, K = x2d.shape
    N = w_t.shape[1]
    in_isize = jnp.dtype(x2d.dtype).itemsize
    out_isize = in_isize
    tm = _pick_tile(M, (512, 256, 128), 8)
    tn = _pick_tile(N, (512, 256, 128), 128)
    # Larger tk only grows the two input tiles; pick the biggest that keeps the
    # double-buffered footprint under budget (safe on all of v5e/v6e/v7x).
    tk = None
    for cand in (2048, 1024, 512, 256, 128):
        if (K >= cand and K % cand == 0
                and _linear_footprint(tm, tn, cand, in_isize, out_isize)
                <= _TILE_VMEM_BUDGET):
            tk = cand
            break
    if tk is None:
        tk = _pick_tile(K, (128,), 128)
    vmem_limit = _clamp_vmem(
        int(1.5 * _linear_footprint(tm, tn, tk, in_isize, out_isize)))

    grid = (M // tm, N // tn, K // tk)
    return pl.pallas_call(
        _matmul_bias_kernel,
        out_shape=jax.ShapeDtypeStruct((M, N), x2d.dtype),
        grid_spec=pltpu.PrefetchScalarGridSpec(
            num_scalar_prefetch=0,
            grid=grid,
            in_specs=[
                pl.BlockSpec((tm, tk), lambda i, j, k: (i, k)),
                pl.BlockSpec((tk, tn), lambda i, j, k: (k, j)),
                pl.BlockSpec((1, tn), lambda i, j, k: (0, j)),
            ],
            out_specs=pl.BlockSpec((tm, tn), lambda i, j, k: (i, j)),
            scratch_shapes=[pltpu.VMEM((tm, tn), jnp.float32)],
        ),
        compiler_params=pltpu.CompilerParams(
            dimension_semantics=("parallel", "parallel", "arbitrary"),
            vmem_limit_bytes=vmem_limit,
        ),
        cost_estimate=pl.CostEstimate(
            flops=2 * M * N * K,
            transcendentals=0,
            bytes_accessed=in_isize * (M * K + K * N) + 4 * N + out_isize * M * N,
        ),
    )(x2d, w_t, b.reshape(1, N).astype(jnp.float32))


# ----------------------------------------------------------------------------
# Kernel 2: flash-style scaled-dot-product attention (online softmax).
# Grid: (B*H, Sq/tq, Skv/tkv); the KV axis is the innermost reduction axis.
# q/k/v blocks are (tq|tkv, d_k) head slices pulled straight from the projected
# activations via index_map lane-block offsets; output is written lane-dense
# into (B, Sq, d_model) (head h -> lane-block h), so no split/combine transposes.
# The 1/sqrt(d_k) scale is already folded into the Q projection weights.
# ----------------------------------------------------------------------------
def _flash_attn_kernel(q_ref, k_ref, v_ref, o_ref, m_sc, l_sc, acc_sc):
    ki = pl.program_id(2)

    @pl.when(ki == 0)
    def _init():
        m_sc[...] = jnp.full(m_sc.shape, -jnp.inf, dtype=m_sc.dtype)
        l_sc[...] = jnp.zeros(l_sc.shape, dtype=l_sc.dtype)
        acc_sc[...] = jnp.zeros(acc_sc.shape, dtype=acc_sc.dtype)

    q = q_ref[...]          # (tq, d_k)  (scale pre-folded into W_q)
    k = k_ref[...]          # (tkv, d_k)
    v = v_ref[...]          # (tkv, d_k)

    # QK^T: contract the last dims directly on the MXU (no k.T through the XLU).
    s = lax.dot_general(q, k, (((1,), (1,)), ((), ())),
                        preferred_element_type=jnp.float32)     # (tq, tkv) f32
    # TODO(synk): attention mask (mask == 0 -> -1e9) would be added to `s` here
    # (before the running max); callers passing a mask get NotImplementedError.

    m_prev = m_sc[...]
    m_new = jnp.maximum(m_prev, jnp.max(s, axis=-1, keepdims=True))
    alpha = jnp.exp(m_prev - m_new)
    p = jnp.exp(s - m_new)

    l_sc[...] = alpha * l_sc[...] + jnp.sum(p, axis=-1, keepdims=True)
    acc_sc[...] = alpha * acc_sc[...] + jnp.dot(
        p.astype(v.dtype), v, preferred_element_type=jnp.float32)
    m_sc[...] = m_new

    @pl.when(ki == pl.num_programs(2) - 1)
    def _finalize():
        # Exact divide (runs once per output block) — the approx reciprocal was
        # the source of the earlier ~2e-3 relative error.
        o_ref[...] = (acc_sc[...] / l_sc[...]).astype(o_ref.dtype)


def flash_attention(q_arr, k_arr, v_arr, *, num_heads, d_k, head_offsets):
    """q_arr: (B, Sq, *), k_arr/v_arr: (B, Skv, *) where head h of each tensor
    lives at lane-block offset (head_offsets[i] + h) * d_k.  Returns
    (B, Sq, num_heads * d_k) with head h written at lane offset h * d_k."""
    B, Sq, _ = q_arr.shape
    Skv = k_arr.shape[1]
    d_model = num_heads * d_k
    # TODO(synk): when d_k < 128, pack multiple heads per grid step so the last
    # block dim stays a lane-dense multiple of 128.
    assert d_k % 128 == 0, "flash kernel currently requires 128-aligned d_k"

    tq = _pick_tile(Sq, (512, 256, 128), 8)
    tkv = _pick_tile(Skv, (1024, 512, 256, 128), 8)
    qo, ko, vo = head_offsets
    H = num_heads

    isize = jnp.dtype(q_arr.dtype).itemsize
    footprint = (2 * (tq * d_k + 2 * tkv * d_k + tq * d_k) * isize
                 + tq * (d_k + 2) * 4)
    vmem_limit = _clamp_vmem(int(1.5 * footprint))

    # (B, H) flattened into one leading parallel axis -> better balance across
    # v7x's 2 TensorCores when B or H is tiny.
    q_spec = pl.BlockSpec((pl.Squeezed(), tq, d_k),
                          lambda bh, qi, ki: (bh // H, qi, qo + (bh % H)))
    k_spec = pl.BlockSpec((pl.Squeezed(), tkv, d_k),
                          lambda bh, qi, ki: (bh // H, ki, ko + (bh % H)))
    v_spec = pl.BlockSpec((pl.Squeezed(), tkv, d_k),
                          lambda bh, qi, ki: (bh // H, ki, vo + (bh % H)))
    o_spec = pl.BlockSpec((pl.Squeezed(), tq, d_k),
                          lambda bh, qi, ki: (bh // H, qi, bh % H))

    n_q_tiles = Sq // tq
    return pl.pallas_call(
        _flash_attn_kernel,
        out_shape=jax.ShapeDtypeStruct((B, Sq, d_model), q_arr.dtype),
        grid_spec=pltpu.PrefetchScalarGridSpec(
            num_scalar_prefetch=0,
            grid=(B * H, n_q_tiles, Skv // tkv),
            in_specs=[q_spec, k_spec, v_spec],
            out_specs=o_spec,
            scratch_shapes=[
                pltpu.VMEM((tq, 1), jnp.float32),     # running max m
                pltpu.VMEM((tq, 1), jnp.float32),     # running denom l
                pltpu.VMEM((tq, d_k), jnp.float32),   # running accumulator
            ],
        ),
        compiler_params=pltpu.CompilerParams(
            dimension_semantics=("parallel", "parallel", "arbitrary"),
            vmem_limit_bytes=vmem_limit,
        ),
        cost_estimate=pl.CostEstimate(
            flops=4 * B * H * Sq * Skv * d_k,
            transcendentals=B * H * Sq * Skv,
            bytes_accessed=isize * (B * H * Sq * d_k                      # Q read
                                    + 2 * B * H * n_q_tiles * Skv * d_k   # K/V re-reads
                                    + B * H * Sq * d_k),                  # O write
        ),
    )(q_arr, k_arr, v_arr)


# ----------------------------------------------------------------------------
# Module wrapper.
# ----------------------------------------------------------------------------
class MultiHeadAttention:
    def __init__(self, d_model, num_heads, key, compute_dtype=jnp.float32):
        assert d_model % num_heads == 0, "d_model must be divisible by num_heads"
        self.d_model = d_model
        self.num_heads = num_heads
        self.d_k = d_model // num_heads
        self.compute_dtype = compute_dtype
        ks = jax.random.split(key, 8)
        bound = 1.0 / math.sqrt(d_model)  # PyTorch nn.Linear default init range

        def init_wt(kw):  # stored already transposed: (D_in, D_out)
            return jax.random.uniform(kw, (d_model, d_model), jnp.float32, -bound, bound)

        def init_b(kb):
            return jax.random.uniform(kb, (d_model,), jnp.float32, -bound, bound)

        # Master (PyTorch-equivalent) parameters, f32.
        self.wq_t, self.bq = init_wt(ks[0]), init_b(ks[1])
        self.wk_t, self.bk = init_wt(ks[2]), init_b(ks[3])
        self.wv_t, self.bv = init_wt(ks[4]), init_b(ks[5])
        self.wo_t, self.bo = init_wt(ks[6]), init_b(ks[7])

        # Kernel parameters, built once at init:
        #  * 1/sqrt(d_k) softmax scale folded into W_q / b_q,
        #  * weights cast to the MXU compute dtype (bf16 halves HBM/VMEM bytes,
        #    accumulation stays f32 inside the kernels),
        #  * biases kept f32 (added to the f32 accumulator at k==0),
        #  * fused QKV weight/bias for the self-attention path.
        scale = 1.0 / math.sqrt(self.d_k)
        cd = compute_dtype
        self._wq, self._bq = (self.wq_t * scale).astype(cd), self.bq * scale
        self._wk, self._bk = self.wk_t.astype(cd), self.bk
        self._wv, self._bv = self.wv_t.astype(cd), self.bv
        self._wo, self._bo = self.wo_t.astype(cd), self.bo
        self._w_qkv = jnp.concatenate([self._wq, self._wk, self._wv], axis=1)
        self._b_qkv = jnp.concatenate([self._bq, self._bk, self._bv])

    def __call__(self, Q, K, V, mask=None):
        if mask is not None:
            # TODO(synk): plumb the mask into the flash kernel as a (tq, tkv)
            # block added to the scores (mask==0 -> -1e9) before the running max.
            raise NotImplementedError("attention mask not supported in Pallas kernel")
        B, S, D = Q.shape
        H, d_k = self.num_heads, self.d_k
        cd = self.compute_dtype

        if (Q is K) and (K is V):
            # Self-attention fast path: fused QKV projection, x read from HBM once.
            x = Q.reshape(B * S, D).astype(cd)
            qkv = linear(x, self._w_qkv, self._b_qkv).reshape(B, S, 3 * D)
            attn = flash_attention(qkv, qkv, qkv, num_heads=H, d_k=d_k,
                                   head_offsets=(0, H, 2 * H))
        else:
            q = linear(Q.reshape(B * S, D).astype(cd), self._wq, self._bq).reshape(B, S, D)
            k = linear(K.reshape(-1, D).astype(cd), self._wk, self._bk).reshape(B, -1, D)
            v = linear(V.reshape(-1, D).astype(cd), self._wv, self._bv).reshape(B, -1, D)
            attn = flash_attention(q, k, v, num_heads=H, d_k=d_k,
                                   head_offsets=(0, 0, 0))
        # attn is already (B, S, d_model) with heads laid out lane-dense:
        # no combine_heads transpose needed.
        out = linear(attn.reshape(B * S, D), self._wo, self._bo).reshape(B, S, D)
        return out.astype(Q.dtype)


def _reference(mha, Q, K, V):
    """Pure-JAX f32 reference (matches the PyTorch module semantics)."""
    def lin(x, w_t, b):
        return x @ w_t + b

    B, Sq, D = Q.shape
    H, d_k = mha.num_heads, mha.d_k

    def split(x):
        b, s, _ = x.shape
        return x.reshape(b, s, H, d_k).transpose(0, 2, 1, 3)

    q = split(lin(Q, mha.wq_t, mha.bq))
    k = split(lin(K, mha.wk_t, mha.bk))
    v = split(lin(V, mha.wv_t, mha.bv))
    s = jnp.einsum("bhqd,bhkd->bhqk", q, k) / math.sqrt(d_k)
    p = jax.nn.softmax(s, axis=-1)
    o = jnp.einsum("bhqk,bhkd->bhqd", p, v)
    o = o.transpose(0, 2, 1, 3).reshape(B, Sq, D)
    return lin(o, mha.wo_t, mha.bo)


if __name__ == "__main__":
    key = jax.random.PRNGKey(0)
    k_param, k_x, k_kv = jax.random.split(key, 3)

    # 128-aligned shapes so attention heads (d_k=128) and all matmul tiles are
    # lane-dense and MXU-friendly, while staying small.
    batch, seq, d_model, num_heads = 2, 128, 256, 2
    x = jax.random.normal(k_x, (batch, seq, d_model), jnp.float32)
    kv = jax.random.normal(k_kv, (batch, seq, d_model), jnp.float32)

    # --- f32 compute path ---------------------------------------------------
    mha = MultiHeadAttention(d_model, num_heads, k_param)
    ref = _reference(mha, x, x, x)

    out = jax.block_until_ready(mha(x, x, x))          # self-attn (fused QKV)
    assert out.shape == (batch, seq, d_model)
    err = float(jnp.max(jnp.abs(out - ref)) / (jnp.max(jnp.abs(ref)) + 1e-8))
    assert err < 1e-3, f"self-attention (f32) mismatch vs reference: rel err {err}"

    out2 = jax.block_until_ready(mha(x, kv, kv))       # cross-attn path
    ref2 = _reference(mha, x, kv, kv)
    err2 = float(jnp.max(jnp.abs(out2 - ref2)) / (jnp.max(jnp.abs(ref2)) + 1e-8))
    assert err2 < 1e-3, f"cross-attention (f32) mismatch vs reference: rel err {err2}"

    # --- bf16 MXU-operand path (f32 accumulation / softmax statistics) -------
    mha_bf16 = MultiHeadAttention(d_model, num_heads, k_param,
                                  compute_dtype=jnp.bfloat16)
    out_bf16 = jax.block_until_ready(mha_bf16(x, x, x))
    err_bf16 = float(jnp.max(jnp.abs(out_bf16 - ref)) / (jnp.max(jnp.abs(ref)) + 1e-8))
    assert err_bf16 < 1e-1, f"self-attention (bf16) mismatch vs reference: rel err {err_bf16}"

    print("KERNEL_OK")
</pallas_src>

<mosaic_0001>
module attributes {stable_mosaic.version = 11 : i64} {
  func.func @_matmul_bias_kernel(%arg0: i32, %arg1: i32, %arg2: i32, %arg3: memref<256x256xf32, #tpu.memory_space<vmem>>, %arg4: memref<256x256xf32, #tpu.memory_space<vmem>>, %arg5: memref<1x256xf32, #tpu.memory_space<vmem>>, %arg6: memref<256x256xf32, #tpu.memory_space<vmem>>, %arg7: memref<256x256xf32, #tpu.memory_space<vmem>>) attributes {dimension_semantics = [#tpu.dimension_semantics<parallel>, #tpu.dimension_semantics<parallel>, #tpu.dimension_semantics<arbitrary>], iteration_bounds = array<i64: 1, 3, 1>, scalar_prefetch = 0 : i64, scratch_operands = 1 : i64, tpu.core_type = #tpu.core_type<tc>, window_params = [{transform_indices = @transform_0, window_bounds = array<i64: 256, 256>}, {transform_indices = @transform_1, window_bounds = array<i64: 256, 256>}, {transform_indices = @transform_2, window_bounds = array<i64: 1, 256>}, {transform_indices = @transform_3, window_bounds = array<i64: 256, 256>}]} {
    %c0_i32 = arith.constant 0 : i32
    %0 = arith.cmpi eq, %arg2, %c0_i32 : i32
    %1 = arith.extui %0 : i1 to i32
    %c0_i32_0 = arith.constant 0 : i32
    %2 = arith.cmpi ne, %1, %c0_i32_0 : i32
    scf.if %2 {
      %c0_10 = arith.constant 0 : index
      %c0_11 = arith.constant 0 : index
      %12 = vector.load %arg5[%c0_10, %c0_11] : memref<1x256xf32, #tpu.memory_space<vmem>>, vector<1x256xf32>
      %13 = vector.shape_cast %12 : vector<1x256xf32> to vector<1x256xf32>
      %14 = vector.broadcast %13 : vector<1x256xf32> to vector<256x256xf32>
      %c0_12 = arith.constant 0 : index
      %c0_13 = arith.constant 0 : index
      %15 = vector.load %arg7[%c0_12, %c0_13] : memref<256x256xf32, #tpu.memory_space<vmem>>, vector<256x256xf32>
      tpu.vector_store %arg7[%c0_12, %c0_13], %14 {strides = array<i32>} : memref<256x256xf32, #tpu.memory_space<vmem>>, vector<256x256xf32>,
    } else {
    }
    %c0 = arith.constant 0 : index
    %c0_1 = arith.constant 0 : index
    %3 = vector.load %arg7[%c0, %c0_1] : memref<256x256xf32, #tpu.memory_space<vmem>>, vector<256x256xf32>
    %c0_2 = arith.constant 0 : index
    %c0_3 = arith.constant 0 : index
    %4 = vector.load %arg3[%c0_2, %c0_3] : memref<256x256xf32, #tpu.memory_space<vmem>>, vector<256x256xf32>
    %c0_4 = arith.constant 0 : index
    %c0_5 = arith.constant 0 : index
    %5 = vector.load %arg4[%c0_4, %c0_5] : memref<256x256xf32, #tpu.memory_space<vmem>>, vector<256x256xf32>
    %cst = arith.constant dense<0.000000e+00> : vector<256x256xf32>
    %6 = tpu.matmul %4, %5, %cst {dimension_numbers = #tpu.dot_dimension_numbers<[1], [0], [0], [1], [0, 0, 1, 1], [], []>} : vector<256x256xf32>, vector<256x256xf32>, vector<256x256xf32> -> vector<256x256xf32>
    %7 = arith.addf %3, %6 : vector<256x256xf32>
    %c0_6 = arith.constant 0 : index
    %c0_7 = arith.constant 0 : index
    %8 = vector.load %arg7[%c0_6, %c0_7] : memref<256x256xf32, #tpu.memory_space<vmem>>, vector<256x256xf32>
    tpu.vector_store %arg7[%c0_6, %c0_7], %7 {strides = array<i32>} : memref<256x256xf32, #tpu.memory_space<vmem>>, vector<256x256xf32>,
    %c0_i32_8 = arith.constant 0 : i32
    %9 = arith.cmpi eq, %arg2, %c0_i32_8 : i32
    %10 = arith.extui %9 : i1 to i32
    %c0_i32_9 = arith.constant 0 : i32
    %11 = arith.cmpi ne, %10, %c0_i32_9 : i32
    scf.if %11 {
      %c0_10 = arith.constant 0 : index
      %c0_11 = arith.constant 0 : index
      %12 = vector.load %arg7[%c0_10, %c0_11] : memref<256x256xf32, #tpu.memory_space<vmem>>, vector<256x256xf32>
      %c0_12 = arith.constant 0 : index
      %c0_13 = arith.constant 0 : index
      %13 = vector.load %arg6[%c0_12, %c0_13] : memref<256x256xf32, #tpu.memory_space<vmem>>, vector<256x256xf32>
      tpu.vector_store %arg6[%c0_12, %c0_13], %12 {strides = array<i32>} : memref<256x256xf32, #tpu.memory_space<vmem>>, vector<256x256xf32>,
    } else {
    }
    return
  }
  func.func @transform_0(%arg0: i32, %arg1: i32, %arg2: i32) -> (i32, i32) {
    %c0_i32 = arith.constant 0 : i32
    return %arg0, %arg2 : i32, i32
  }
  func.func @transform_1(%arg0: i32, %arg1: i32, %arg2: i32) -> (i32, i32) {
    %c0_i32 = arith.constant 0 : i32
    return %arg2, %arg1 : i32, i32
  }
  func.func @transform_2(%arg0: i32, %arg1: i32, %arg2: i32) -> (i32, i32) {
    %c0_i32 = arith.constant 0 : i32
    %c0_i32_0 = arith.constant 0 : i32
    return %c0_i32, %arg1 : i32, i32
  }
  func.func @transform_3(%arg0: i32, %arg1: i32, %arg2: i32) -> (i32, i32) {
    %c0_i32 = arith.constant 0 : i32
    return %arg0, %arg1 : i32, i32
  }
}

</mosaic_0001>

<llo_original>
// kernel: tpu_custom_call.1
$region0: #{tpu_custom_call.1}
  #allocation0 [shape = 'u32[]', space=smem, size = 0x4, offset = 0x4, fixed_abs, tag = 'smem constant byte address 0x4 - core index']
  #allocation1 [shape = 'u32[144,128]{1,0:T(1,128)}', space=vmem, size = 0x12000, scoped, tag = 'internal scratch']
  #allocation2 [shape = 'f32[256,256]{1,0:T(8,128)}', space=vmem, size = 0x40000, scoped, tag = 'scratch operand']
  %s0 = inlined_call_operand.hbm [shape: f32[256,256], index: 0, kind: input, shape index: {}]
  %s1 = inlined_call_operand.hbm [shape: f32[256,768], index: 1, kind: input, shape index: {}]
  %s2 = inlined_call_operand.vmem [shape: f32[1,768], index: 2, kind: input, shape index: {}]
  %s3 = inlined_call_operand.hbm [shape: f32[256,768], index: 3, kind: output, shape index: {}]
  %s4 = sld [smem:[#allocation0]]
  $region61: #{tpu_custom_call.1} parent=0
    _
  %s6 = ssub.s32 1, %s4
  %s7 = scalar_select 0, %s6, %s4
  $region1: #{tpu_custom_call.1} parent=0
    #allocation3 [shape = 'u8[262144]{0}', space=vmem, size = 0x40000, scoped, tag = 'input window, operand 0, single buffered']
    #allocation4 [shape = 's32[2]{0}', space=sflag, size = 0x8, scoped, tag = 'scoped memory for tpu_custom_call.1']
    #allocation5 [shape = 's32[2]{0}', space=sflag, size = 0x8, scoped, tag = 'scoped memory for tpu_custom_call.1']
    #allocation6 [shape = 'u8[524288]{0}', space=vmem, size = 0x80000, scoped, tag = 'input window, operand 1']
    #allocation7 [shape = 's32[2]{0}', space=sflag, size = 0x8, scoped, tag = 'scoped memory for tpu_custom_call.1']
    #allocation8 [shape = 'u8[524288]{0}', space=vmem, size = 0x80000, scoped, tag = 'output window, operand 0']
    %8 = vsyncpa [#allocation4], 0
    %9 = vsyncpa [#allocation7], 0
    %s10 = scalar_lea.sflag [#allocation7], 1
    %11 = vsyncpa %s10, 0
    %12 = vsyncpa [#allocation5], 0
    %s13 = scalar_lea.sflag [#allocation5], 1
    %14 = vsyncpa %s13, 0
    loop: start=0, step=1, limit=5
    $region2: #{tpu_custom_call.1} parent=1 // loop_pre_header
      _
    $region3: #{tpu_custom_call.1} parent=1 // loop_header
      %s16 = sphi 0, %s20
      %p17 = scmp.ge.s32.totalorder %s16, 5
      %s23 = sphi 0, %s42
      %s24 = sphi 0, %s38
      %s25 = sphi 0, %s34
      %s26 = sphi 0, %s23
      %s27 = sphi 0, %s24
      %s28 = sphi 0, %s25
      %s29 = sphi 0, %s26
      %s30 = sphi 0, %s27
      %s31 = sphi 0, %s28
      %s47 = sphi 0, %s49
      %s50 = sphi 0, %s47
      %s51 = sphi 0, %s50
      %s67 = sphi 0, %s51
      %s75 = sphi 0, %s77
      %s78 = sphi 0, %s75
      %s79 = sphi 0, %s78
      %s95 = sphi 0, %s79
      %s101 = sphi 0, %s103
      %s104 = sphi 0, %s101
      %s105 = sphi 0, %s104
      %s121 = sphi 0, %s105
      %s129 = sphi 0, %s131
      %s132 = sphi 0, %s129
      %s133 = sphi 0, %s132
      %s149 = sphi 0, %s133
    $region4: #{tpu_custom_call.1} parent=1 // loop_header_branch
      %19 = sbr.rel (%p17) target = $region8
    $region5: #{tpu_custom_call.1} parent=1 // loop_body
      %s21 = ssub.s32 %s16, 1
      %s22 = ssub.s32 %s16, 2
      %s32 = sadd.s32 1, %s25
      %p33 = scmp.ge.s32.totalorder %s32, 1
      %s34 = scalar_select %p33, 0, %s32
      %s35 = sadd.s32 1, %s24
      %s36 = scalar_select %p33, %s35, %s24
      %p37 = scmp.ge.s32.totalorder %s36, 3
      %s38 = scalar_select %p37, 0, %s36
      %s39 = sadd.s32 1, %s23
      %s40 = scalar_select %p37, %s39, %s23
      %p41 = scmp.ge.s32.totalorder %s40, 1
      %s42 = scalar_select %p41, 0, %s40
      %s43 = ssub.s32 %s23, %s42
      %s44 = ssub.s32 %s25, %s34
      %s45 = sor.u32 %s43, %s44
      %p46 = scmp.eq.s32.totalorder %s45, 0
      %s48 = sadd.s32 %s47, 1
      %s49 = scalar_select %p46, %s47, %s48
      %p52 = pneg %p46
      %p53 = scmp.eq.s32.totalorder %s16, 2
      %p54 = por %p52, %p53
      %p55 = scmp.ne.s32.totalorder %s47, %s50
      %p56 = scmp.eq.s32.totalorder %s16, 0
      %p57 = por %p55, %p56
      %p58 = scmp.ne.s32.totalorder %s47, %s50
      %p59 = scmp.eq.s32.totalorder %s21, 2
      %p60 = por %p58, %p59
      %p61 = scmp.ne.s32.totalorder %s50, %s51
      %p62 = scmp.eq.s32.totalorder %s21, 0
      %p63 = por %p61, %p62
      %p64 = scmp.ne.s32.totalorder %s50, %s51
      %p65 = scmp.eq.s32.totalorder %s22, 2
      %p66 = por %p64, %p65
      %p68 = scmp.ne.s32.totalorder %s51, %s67
      %p69 = scmp.eq.s32.totalorder %s22, 0
      %p70 = por %p68, %p69
      %s71 = ssub.s32 %s25, %s34
      %s72 = ssub.s32 %s24, %s38
      %s73 = sor.u32 %s71, %s72
      %p74 = scmp.eq.s32.totalorder %s73, 0
      %s76 = sadd.s32 %s75, 1
      %s77 = scalar_select %p74, %s75, %s76
      %p80 = pneg %p74
      %p81 = scmp.eq.s32.totalorder %s16, 2
      %p82 = por %p80, %p81
      %p83 = scmp.ne.s32.totalorder %s75, %s78
      %p84 = scmp.eq.s32.totalorder %s16, 0
      %p85 = por %p83, %p84
      %p86 = scmp.ne.s32.totalorder %s75, %s78
      %p87 = scmp.eq.s32.totalorder %s21, 2
      %p88 = por %p86, %p87
      %p89 = scmp.ne.s32.totalorder %s78, %s79
      %p90 = scmp.eq.s32.totalorder %s21, 0
      %p91 = por %p89, %p90
      %p92 = scmp.ne.s32.totalorder %s78, %s79
      %p93 = scmp.eq.s32.totalorder %s22, 2
      %p94 = por %p92, %p93
      %p96 = scmp.ne.s32.totalorder %s79, %s95
      %p97 = scmp.eq.s32.totalorder %s22, 0
      %p98 = por %p96, %p97
      %s99 = ssub.s32 %s24, %s38
      %p100 = scmp.eq.s32.totalorder %s99, 0
      %s102 = sadd.s32 %s101, 1
      %s103 = scalar_select %p100, %s101, %s102
      %p106 = pneg %p100
      %p107 = scmp.eq.s32.totalorder %s16, 2
      %p108 = por %p106, %p107
      %p109 = scmp.ne.s32.totalorder %s101, %s104
      %p110 = scmp.eq.s32.totalorder %s16, 0
      %p111 = por %p109, %p110
      %p112 = scmp.ne.s32.totalorder %s101, %s104
      %p113 = scmp.eq.s32.totalorder %s21, 2
      %p114 = por %p112, %p113
      %p115 = scmp.ne.s32.totalorder %s104, %s105
      %p116 = scmp.eq.s32.totalorder %s21, 0
      %p117 = por %p115, %p116
      %p118 = scmp.ne.s32.totalorder %s104, %s105
      %p119 = scmp.eq.s32.totalorder %s22, 2
      %p120 = por %p118, %p119
      %p122 = scmp.ne.s32.totalorder %s105, %s121
      %p123 = scmp.eq.s32.totalorder %s22, 0
      %p124 = por %p122, %p123
      %s125 = ssub.s32 %s23, %s42
      %s126 = ssub.s32 %s24, %s38
      %s127 = sor.u32 %s125, %s126
      %p128 = scmp.eq.s32.totalorder %s127, 0
      %s130 = sadd.s32 %s129, 1
      %s131 = scalar_select %p128, %s129, %s130
      %p134 = pneg %p128
      %p135 = scmp.eq.s32.totalorder %s16, 2
      %p136 = por %p134, %p135
      %p137 = scmp.ne.s32.totalorder %s129, %s132
      %p138 = scmp.eq.s32.totalorder %s16, 0
      %p139 = por %p137, %p138
      %p140 = scmp.ne.s32.totalorder %s129, %s132
      %p141 = scmp.eq.s32.totalorder %s21, 2
      %p142 = por %p140, %p141
      %p143 = scmp.ne.s32.totalorder %s132, %s133
      %p144 = scmp.eq.s32.totalorder %s21, 0
      %p145 = por %p143, %p144
      %p146 = scmp.ne.s32.totalorder %s132, %s133
      %p147 = scmp.eq.s32.totalorder %s22, 2
      %p148 = por %p146, %p147
      %p150 = scmp.ne.s32.totalorder %s133, %s149
      %p151 = scmp.eq.s32.totalorder %s22, 0
      %p152 = por %p150, %p151
      %p153 = scmp.le.s32.totalorder 1, %s16
      %p154 = scmp.lt.s32.totalorder %s16, 4
      %p155 = pnand %p153, %p154
      %p156 = pneg %p155
      // Predicated region
      $region9: #{tpu_custom_call.1} parent=5 // pred_check
        _
      $region10: #{tpu_custom_call.1} parent=5 // pred_check_branch
        %158 = sbr.rel (%p155) target = $region12
      $region11: #{tpu_custom_call.1} parent=5 // pred_region
        %s159 = ssub.s32 %s16, 1
        // Predicated region
        $region13: #{tpu_custom_call.1} parent=11 // pred_check
          %p160 = pneg %p63
        $region14: #{tpu_custom_call.1} parent=11 // pred_check_branch
          %162 = sbr.rel (%p160) target = $region16
        $region15: #{tpu_custom_call.1} parent=11 // pred_region
          %s163 = smul.u32 32, %s26
          %s164 = smul.u32 2, %s28
          %s166 = ssub.s32 8192, 8192
          %167 = vsyncadd [#allocation4], %s166
          %s168 = smul.addr %s163, 2
          %s169 = sadd.s32 %s164, %s168
          %s170 = smul.addr %s169, 128
          %s171 = scalar_lea.hbm %s0, %s170
          %s172 = sshll.u32 [#allocation3], 4
          %s173 = int_to_ptr.vmem [resolvable:$true] %s172
          %178 = dma.hbm_to_vmem [thread:$0]  %s171, 8192, %s173, [#allocation4], 256, 256, 16
        $region16: #{tpu_custom_call.1} parent=11 // pred_fallthru
          _
      $region12: #{tpu_custom_call.1} parent=5 // pred_fallthru
        _
      %p179 = scmp.lt.s32.totalorder %s16, 3
      // Predicated region
      $region17: #{tpu_custom_call.1} parent=5 // pred_check
        %p180 = pneg %p179
      $region18: #{tpu_custom_call.1} parent=5 // pred_check_branch
        %182 = sbr.rel (%p180) target = $region20
      $region19: #{tpu_custom_call.1} parent=5 // pred_region
        // Predicated region
        $region21: #{tpu_custom_call.1} parent=19 // pred_check
          %p183 = pneg %p85
        $region22: #{tpu_custom_call.1} parent=19 // pred_check_branch
          %185 = sbr.rel (%p183) target = $region24
        $region23: #{tpu_custom_call.1} parent=19 // pred_region
          %s186 = sand.u32 %s75, 1
          %s187 = scalar_lea.sflag [#allocation7], %s186
          %s188 = sand.u32 %s75, 1
          %s189 = smul.addr %s188, 512
          %s190 = scalar_lea.vmem [#allocation6], %s189
          %s191 = smul.u32 32, %s25
          %s192 = smul.u32 2, %s24
          %s194 = ssub.s32 8192, 8192
          %195 = vsyncadd %s187, %s194
          %s196 = smul.addr %s191, 6
          %s197 = sadd.s32 %s192, %s196
          %s198 = smul.addr %s197, 128
          %s199 = scalar_lea.hbm %s1, %s198
          %s200 = sshll.u32 %s190, 4
          %s201 = int_to_ptr.vmem [resolvable:$true] %s200
          %206 = dma.hbm_to_vmem [thread:$0]  %s199, 8192, %s201, %s187, 768, 256, 16
        $region24: #{tpu_custom_call.1} parent=19 // pred_fallthru
          _
        // Predicated region
        $region25: #{tpu_custom_call.1} parent=19 // pred_check
          %p207 = pneg %p111
        $region26: #{tpu_custom_call.1} parent=19 // pred_check_branch
          %209 = sbr.rel (%p207) target = $region28
        $region27: #{tpu_custom_call.1} parent=19 // pred_region
          %s210 = smul.u32 2, %s24
          %p211 = scmp.lt.s32.totalorder %s210, 5
          %s212 = scalar_select %p211, %s210, 5
          %s213 = scalar_lea.vmem %s2, %s212
          %s214 = smul.u32 2, %s24
        $region28: #{tpu_custom_call.1} parent=19 // pred_fallthru
          _
      $region20: #{tpu_custom_call.1} parent=5 // pred_fallthru
        _
      %p215 = scmp.le.s32.totalorder 1, %s16
      %p216 = scmp.lt.s32.totalorder %s16, 4
      %p217 = pnand %p215, %p216
      %p218 = pneg %p217
      // Predicated region
      $region29: #{tpu_custom_call.1} parent=5 // pred_check
        _
      $region30: #{tpu_custom_call.1} parent=5 // pred_check_branch
        %220 = sbr.rel (%p217) target = $region32
      $region31: #{tpu_custom_call.1} parent=5 // pred_region
        %s221 = ssub.s32 %s16, 1
        // Predicated region
        $region33: #{tpu_custom_call.1} parent=31 // pred_check
          %p222 = pneg %p63
        $region34: #{tpu_custom_call.1} parent=31 // pred_check_branch
          %224 = sbr.rel (%p222) target = $region36
        $region35: #{tpu_custom_call.1} parent=31 // pred_region
          %225 = dma.done [#allocation4], 8192
        $region36: #{tpu_custom_call.1} parent=31 // pred_fallthru
          _
        %s226 = sand.u32 %s78, 1
        %s227 = scalar_lea.sflag [#allocation7], %s226
        %s228 = sand.u32 %s78, 1
        %s229 = smul.addr %s228, 512
        %s230 = scalar_lea.vmem [#allocation6], %s229
        // Predicated region
        $region37: #{tpu_custom_call.1} parent=31 // pred_check
          %p231 = pneg %p91
        $region38: #{tpu_custom_call.1} parent=31 // pred_check_branch
          %233 = sbr.rel (%p231) target = $region40
        $region39: #{tpu_custom_call.1} parent=31 // pred_region
          %234 = dma.done %s227, 8192
        $region40: #{tpu_custom_call.1} parent=31 // pred_fallthru
          _
        %p235 = pneg %p63
        %p236 = pneg %p60
        %s237 = sand.u32 %s78, 1
        %s238 = scalar_lea.sflag [#allocation7], %s237
        %s239 = sand.u32 %s78, 1
        %s240 = smul.addr %s239, 512
        %s241 = scalar_lea.vmem [#allocation6], %s240
        %p242 = pneg %p91
        %p243 = pneg %p88
        %s244 = smul.u32 2, %s27
        %p245 = scmp.lt.s32.totalorder %s244, 5
        %s246 = scalar_select %p245, %s244, 5
        %s247 = scalar_lea.vmem %s2, %s246
        %p248 = pneg %p117
        %p249 = pneg %p114
        %p250 = pneg %p145
        %p251 = pneg %p142
        %s252 = sand.u32 %s132, 1
        %s253 = scalar_lea.sflag [#allocation5], %s252
        %s254 = sand.u32 %s132, 1
        %s255 = smul.addr %s254, 512
        %s256 = scalar_lea.vmem [#allocation8], %s255
        %s257 = smul.u32 32, %s26
        %s258 = smul.u32 2, %s28
        %s259 = smul.u32 32, %s28
        %s260 = smul.u32 2, %s27
        %s261 = smul.u32 2, %s27
        %p262 = scmp.lt.s32.totalorder %s261, 5
        %s263 = scalar_select %p262, %s261, 5
        %s264 = scalar_lea.vmem %s2, %s263
        %s265 = smul.u32 2, %s27
        %s266 = smul.u32 32, %s26
        %s267 = smul.u32 2, %s27
        %p268 = scmp.eq.s32.totalorder %s28, 0
        // Predicated region
        $region41: #{tpu_custom_call.1} parent=31 // pred_check
          %p269 = pneg %p268
        $region42: #{tpu_custom_call.1} parent=31 // pred_check_branch
          %271 = sbr.rel (%p269) target = $region44
        $region43: #{tpu_custom_call.1} parent=31 // pred_region
          %v272 = vld [vmem:[%s264] sm:$0x3]
          %v274 = vlaneseq
          %v275 = vshrl.u32 %v274, 7
          %v276 = vsub.s32 0, %v275
          %v277 = vrot.slane %v272, %v276
          %v278 = vlaneseq
          %v279 = vshrl.u32 %v278, 7
          %v280 = vsub.s32 1, %v279
          %v281 = vrot.slane %v272, %v280
          %284 = vst [vmem:[#allocation2] sm:$0xff] %v277
          %285 = vst [vmem:[#allocation2 + $0x8] sm:$0xff] %v281
          %286 = vst [vmem:[#allocation2 + $0x10] sm:$0xff] %v277
          %287 = vst [vmem:[#allocation2 + $0x18] sm:$0xff] %v281
          %288 = vst [vmem:[#allocation2 + $0x20] sm:$0xff] %v277
          %289 = vst [vmem:[#allocation2 + $0x28] sm:$0xff] %v281
          %290 = vst [vmem:[#allocation2 + $0x30] sm:$0xff] %v277
          %291 = vst [vmem:[#allocation2 + $0x38] sm:$0xff] %v281
          %292 = vst [vmem:[#allocation2 + $0x40] sm:$0xff] %v277
          %293 = vst [vmem:[#allocation2 + $0x48] sm:$0xff] %v281
          %294 = vst [vmem:[#allocation2 + $0x50] sm:$0xff] %v277
          %295 = vst [vmem:[#allocation2 + $0x58] sm:$0xff] %v281
          %296 = vst [vmem:[#allocation2 + $0x60] sm:$0xff] %v277
          %297 = vst [vmem:[#allocation2 + $0x68] sm:$0xff] %v281
          %298 = vst [vmem:[#allocation2 + $0x70] sm:$0xff] %v277
          %299 = vst [vmem:[#allocation2 + $0x78] sm:$0xff] %v281
          %300 = vst [vmem:[#allocation2 + $0x80] sm:$0xff] %v277
          %301 = vst [vmem:[#allocation2 + $0x88] sm:$0xff] %v281
          %302 = vst [vmem:[#allocation2 + $0x90] sm:$0xff] %v277
          %303 = vst [vmem:[#allocation2 + $0x98] sm:$0xff] %v281
          %304 = vst [vmem:[#allocation2 + $0xa0] sm:$0xff] %v277
          %305 = vst [vmem:[#allocation2 + $0xa8] sm:$0xff] %v281
          %306 = vst [vmem:[#allocation2 + $0xb0] sm:$0xff] %v277
          %307 = vst [vmem:[#allocation2 + $0xb8] sm:$0xff] %v281
          %308 = vst [vmem:[#allocation2 + $0xc0] sm:$0xff] %v277
          %309 = vst [vmem:[#allocation2 + $0xc8] sm:$0xff] %v281
          %310 = vst [vmem:[#allocation2 + $0xd0] sm:$0xff] %v277
          %311 = vst [vmem:[#allocation2 + $0xd8] sm:$0xff] %v281
          %312 = vst [vmem:[#allocation2 + $0xe0] sm:$0xff] %v277
          %313 = vst [vmem:[#allocation2 + $0xe8] sm:$0xff] %v281
          %314 = vst [vmem:[#allocation2 + $0xf0] sm:$0xff] %v277
          %315 = vst [vmem:[#allocation2 + $0xf8] sm:$0xff] %v281
          %316 = vst [vmem:[#allocation2 + $0x100] sm:$0xff] %v277
          %317 = vst [vmem:[#allocation2 + $0x108] sm:$0xff] %v281
          %318 = vst [vmem:[#allocation2 + $0x110] sm:$0xff] %v277
          %319 = vst [vmem:[#allocation2 + $0x118] sm:$0xff] %v281
          %320 = vst [vmem:[#allocation2 + $0x120] sm:$0xff] %v277
          %321 = vst [vmem:[#allocation2 + $0x128] sm:$0xff] %v281
          %322 = vst [vmem:[#allocation2 + $0x130] sm:$0xff] %v277
          %323 = vst [vmem:[#allocation2 + $0x138] sm:$0xff] %v281
          %324 = vst [vmem:[#allocation2 + $0x140] sm:$0xff] %v277
          %325 = vst [vmem:[#allocation2 + $0x148] sm:$0xff] %v281
          %326 = vst [vmem:[#allocation2 + $0x150] sm:$0xff] %v277
          %327 = vst [vmem:[#allocation2 + $0x158] sm:$0xff] %v281
          %328 = vst [vmem:[#allocation2 + $0x160] sm:$0xff] %v277
          %329 = vst [vmem:[#allocation2 + $0x168] sm:$0xff] %v281
          %330 = vst [vmem:[#allocation2 + $0x170] sm:$0xff] %v277
          %331 = vst [vmem:[#allocation2 + $0x178] sm:$0xff] %v281
          %332 = vst [vmem:[#allocation2 + $0x180] sm:$0xff] %v277
          %333 = vst [vmem:[#allocation2 + $0x188] sm:$0xff] %v281
          %334 = vst [vmem:[#allocation2 + $0x190] sm:$0xff] %v277
          %335 = vst [vmem:[#allocation2 + $0x198] sm:$0xff] %v281
          %336 = vst [vmem:[#allocation2 + $0x1a0] sm:$0xff] %v277
          %337 = vst [vmem:[#allocation2 + $0x1a8] sm:$0xff] %v281
          %338 = vst [vmem:[#allocation2 + $0x1b0] sm:$0xff] %v277
          %339 = vst [vmem:[#allocation2 + $0x1b8] sm:$0xff] %v281
          %340 = vst [vmem:[#allocation2 + $0x1c0] sm:$0xff] %v277
          %341 = vst [vmem:[#allocation2 + $0x1c8] sm:$0xff] %v281
          %342 = vst [vmem:[#allocation2 + $0x1d0] sm:$0xff] %v277
          %343 = vst [vmem:[#allocation2 + $0x1d8] sm:$0xff] %v281
          %344 = vst [vmem:[#allocation2 + $0x1e0] sm:$0xff] %v277
          %345 = vst [vmem:[#allocation2 + $0x1e8] sm:$0xff] %v281
          %346 = vst [vmem:[#allocation2 + $0x1f0] sm:$0xff] %v277
          %347 = vst [vmem:[#allocation2 + $0x1f8] sm:$0xff] %v281
        $region44: #{tpu_custom_call.1} parent=31 // pred_fallthru
          _
        %v348 = vld [vmem:[#allocation2] sm:$0xff]
        %v349 = vld [vmem:[#allocation2 + $0x8] sm:$0xff]
        %v350 = vld [vmem:[#allocation2 + $0x10] sm:$0xff]
        %v351 = vld [vmem:[#allocation2 + $0x18] sm:$0xff]
        %v352 = vld [vmem:[#allocation2 + $0x20] sm:$0xff]
        %v353 = vld [vmem:[#allocation2 + $0x28] sm:$0xff]
        %v354 = vld [vmem:[#allocation2 + $0x30] sm:$0xff]
        %v355 = vld [vmem:[#allocation2 + $0x38] sm:$0xff]
        %v356 = vld [vmem:[#allocation2 + $0x40] sm:$0xff]
        %v357 = vld [vmem:[#allocation2 + $0x48] sm:$0xff]
        %v358 = vld [vmem:[#allocation2 + $0x50] sm:$0xff]
        %v359 = vld [vmem:[#allocation2 + $0x58] sm:$0xff]
        %v360 = vld [vmem:[#allocation2 + $0x60] sm:$0xff]
        %v361 = vld [vmem:[#allocation2 + $0x68] sm:$0xff]
        %v362 = vld [vmem:[#allocation2 + $0x70] sm:$0xff]
        %v363 = vld [vmem:[#allocation2 + $0x78] sm:$0xff]
        %v364 = vld [vmem:[#allocation2 + $0x80] sm:$0xff]
        %v365 = vld [vmem:[#allocation2 + $0x88] sm:$0xff]
        %v366 = vld [vmem:[#allocation2 + $0x90] sm:$0xff]
        %v367 = vld [vmem:[#allocation2 + $0x98] sm:$0xff]
        %v368 = vld [vmem:[#allocation2 + $0xa0] sm:$0xff]
        %v369 = vld [vmem:[#allocation2 + $0xa8] sm:$0xff]
        %v370 = vld [vmem:[#allocation2 + $0xb0] sm:$0xff]
        %v371 = vld [vmem:[#allocation2 + $0xb8] sm:$0xff]
        %v372 = vld [vmem:[#allocation2 + $0xc0] sm:$0xff]
        %v373 = vld [vmem:[#allocation2 + $0xc8] sm:$0xff]
        %v374 = vld [vmem:[#allocation2 + $0xd0] sm:$0xff]
        %v375 = vld [vmem:[#allocation2 + $0xd8] sm:$0xff]
        %v376 = vld [vmem:[#allocation2 + $0xe0] sm:$0xff]
        %v377 = vld [vmem:[#allocation2 + $0xe8] sm:$0xff]
        %v378 = vld [vmem:[#allocation2 + $0xf0] sm:$0xff]
        %v379 = vld [vmem:[#allocation2 + $0xf8] sm:$0xff]
        %v380 = vld [vmem:[#allocation2 + $0x100] sm:$0xff]
        %v381 = vld [vmem:[#allocation2 + $0x108] sm:$0xff]
        %v382 = vld [vmem:[#allocation2 + $0x110] sm:$0xff]
        %v383 = vld [vmem:[#allocation2 + $0x118] sm:$0xff]
        %v384 = vld [vmem:[#allocation2 + $0x120] sm:$0xff]
        %v385 = vld [vmem:[#allocation2 + $0x128] sm:$0xff]
        %v386 = vld [vmem:[#allocation2 + $0x130] sm:$0xff]
        %v387 = vld [vmem:[#allocation2 + $0x138] sm:$0xff]
        %v388 = vld [vmem:[#allocation2 + $0x140] sm:$0xff]
        %v389 = vld [vmem:[#allocation2 + $0x148] sm:$0xff]
        %v390 = vld [vmem:[#allocation2 + $0x150] sm:$0xff]
        %v391 = vld [vmem:[#allocation2 + $0x158] sm:$0xff]
        %v392 = vld [vmem:[#allocation2 + $0x160] sm:$0xff]
        %v393 = vld [vmem:[#allocation2 + $0x168] sm:$0xff]
        %v394 = vld [vmem:[#allocation2 + $0x170] sm:$0xff]
        %v395 = vld [vmem:[#allocation2 + $0x178] sm:$0xff]
        %v396 = vld [vmem:[#allocation2 + $0x180] sm:$0xff]
        %v397 = vld [vmem:[#allocation2 + $0x188] sm:$0xff]
        %v398 = vld [vmem:[#allocation2 + $0x190] sm:$0xff]
        %v399 = vld [vmem:[#allocation2 + $0x198] sm:$0xff]
        %v400 = vld [vmem:[#allocation2 + $0x1a0] sm:$0xff]
        %v401 = vld [vmem:[#allocation2 + $0x1a8] sm:$0xff]
        %v402 = vld [vmem:[#allocation2 + $0x1b0] sm:$0xff]
        %v403 = vld [vmem:[#allocation2 + $0x1b8] sm:$0xff]
        %v404 = vld [vmem:[#allocation2 + $0x1c0] sm:$0xff]
        %v405 = vld [vmem:[#allocation2 + $0x1c8] sm:$0xff]
        %v406 = vld [vmem:[#allocation2 + $0x1d0] sm:$0xff]
        %v407 = vld [vmem:[#allocation2 + $0x1d8] sm:$0xff]
        %v408 = vld [vmem:[#allocation2 + $0x1e0] sm:$0xff]
        %v409 = vld [vmem:[#allocation2 + $0x1e8] sm:$0xff]
        %v410 = vld [vmem:[#allocation2 + $0x1f0] sm:$0xff]
        %v411 = vld [vmem:[#allocation2 + $0x1f8] sm:$0xff]
        %v412 = vld [vmem:[#allocation3] sm:$0xff]
        %v413 = vld [vmem:[#allocation3 + $0x8] sm:$0xff]
        %v414 = vld [vmem:[#allocation3 + $0x10] sm:$0xff]
        %v415 = vld [vmem:[#allocation3 + $0x18] sm:$0xff]
        %v416 = vld [vmem:[#allocation3 + $0x20] sm:$0xff]
        %v417 = vld [vmem:[#allocation3 + $0x28] sm:$0xff]
        %v418 = vld [vmem:[#allocation3 + $0x30] sm:$0xff]
        %v419 = vld [vmem:[#allocation3 + $0x38] sm:$0xff]
        %v420 = vld [vmem:[#allocation3 + $0x40] sm:$0xff]
        %v421 = vld [vmem:[#allocation3 + $0x48] sm:$0xff]
        %v422 = vld [vmem:[#allocation3 + $0x50] sm:$0xff]
        %v423 = vld [vmem:[#allocation3 + $0x58] sm:$0xff]
        %v424 = vld [vmem:[#allocation3 + $0x60] sm:$0xff]
        %v425 = vld [vmem:[#allocation3 + $0x68] sm:$0xff]
        %v426 = vld [vmem:[#allocation3 + $0x70] sm:$0xff]
        %v427 = vld [vmem:[#allocation3 + $0x78] sm:$0xff]
        %v428 = vld [vmem:[#allocation3 + $0x80] sm:$0xff]
        %v429 = vld [vmem:[#allocation3 + $0x88] sm:$0xff]
        %v430 = vld [vmem:[#allocation3 + $0x90] sm:$0xff]
        %v431 = vld [vmem:[#allocation3 + $0x98] sm:$0xff]
        %v432 = vld [vmem:[#allocation3 + $0xa0] sm:$0xff]
        %v433 = vld [vmem:[#allocation3 + $0xa8] sm:$0xff]
        %v434 = vld [vmem:[#allocation3 + $0xb0] sm:$0xff]
        %v435 = vld [vmem:[#allocation3 + $0xb8] sm:$0xff]
        %v436 = vld [vmem:[#allocation3 + $0xc0] sm:$0xff]
        %v437 = vld [vmem:[#allocation3 + $0xc8] sm:$0xff]
        %v438 = vld [vmem:[#allocation3 + $0xd0] sm:$0xff]
        %v439 = vld [vmem:[#allocation3 + $0xd8] sm:$0xff]
        %v440 = vld [vmem:[#allocation3 + $0xe0] sm:$0xff]
        %v441 = vld [vmem:[#allocation3 + $0xe8] sm:$0xff]
        %v442 = vld [vmem:[#allocation3 + $0xf0] sm:$0xff]
        %v443 = vld [vmem:[#allocation3 + $0xf8] sm:$0xff]
        %v444 = vld [vmem:[#allocation3 + $0x100] sm:$0xff]
        %v445 = vld [vmem:[#allocation3 + $0x108] sm:$0xff]
        %v446 = vld [vmem:[#allocation3 + $0x110] sm:$0xff]
        %v447 = vld [vmem:[#allocation3 + $0x118] sm:$0xff]
        %v448 = vld [vmem:[#allocation3 + $0x120] sm:$0xff]
        %v449 = vld [vmem:[#allocation3 + $0x128] sm:$0xff]
        %v450 = vld [vmem:[#allocation3 + $0x130] sm:$0xff]
        %v451 = vld [vmem:[#allocation3 + $0x138] sm:$0xff]
        %v452 = vld [vmem:[#allocation3 + $0x140] sm:$0xff]
        %v453 = vld [vmem:[#allocation3 + $0x148] sm:$0xff]
        %v454 = vld [vmem:[#allocation3 + $0x150] sm:$0xff]
        %v455 = vld [vmem:[#allocation3 + $0x158] sm:$0xff]
        %v456 = vld [vmem:[#allocation3 + $0x160] sm:$0xff]
        %v457 = vld [vmem:[#allocation3 + $0x168] sm:$0xff]
        %v458 = vld [vmem:[#allocation3 + $0x170] sm:$0xff]
        %v459 = vld [vmem:[#allocation3 + $0x178] sm:$0xff]
        %v460 = vld [vmem:[#allocation3 + $0x180] sm:$0xff]
        %v461 = vld [vmem:[#allocation3 + $0x188] sm:$0xff]
        %v462 = vld [vmem:[#allocation3 + $0x190] sm:$0xff]
        %v463 = vld [vmem:[#allocation3 + $0x198] sm:$0xff]
        %v464 = vld [vmem:[#allocation3 + $0x1a0] sm:$0xff]
        %v465 = vld [vmem:[#allocation3 + $0x1a8] sm:$0xff]
        %v466 = vld [vmem:[#allocation3 + $0x1b0] sm:$0xff]
        %v467 = vld [vmem:[#allocation3 + $0x1b8] sm:$0xff]
        %v468 = vld [vmem:[#allocation3 + $0x1c0] sm:$0xff]
        %v469 = vld [vmem:[#allocation3 + $0x1c8] sm:$0xff]
        %v470 = vld [vmem:[#allocation3 + $0x1d0] sm:$0xff]
        %v471 = vld [vmem:[#allocation3 + $0x1d8] sm:$0xff]
        %v472 = vld [vmem:[#allocation3 + $0x1e0] sm:$0xff]
        %v473 = vld [vmem:[#allocation3 + $0x1e8] sm:$0xff]
        %v474 = vld [vmem:[#allocation3 + $0x1f0] sm:$0xff]
        %v475 = vld [vmem:[#allocation3 + $0x1f8] sm:$0xff]
        %v476 = vld [vmem:[%s230] sm:$0xff]
        %v477 = vld [vmem:[%s230 + $0x8] sm:$0xff]
        %v478 = vld [vmem:[%s230 + $0x10] sm:$0xff]
        %v479 = vld [vmem:[%s230 + $0x18] sm:$0xff]
        %v480 = vld [vmem:[%s230 + $0x20] sm:$0xff]
        %v481 = vld [vmem:[%s230 + $0x28] sm:$0xff]
        %v482 = vld [vmem:[%s230 + $0x30] sm:$0xff]
        %v483 = vld [vmem:[%s230 + $0x38] sm:$0xff]
        %v484 = vld [vmem:[%s230 + $0x40] sm:$0xff]
        %v485 = vld [vmem:[%s230 + $0x48] sm:$0xff]
        %v486 = vld [vmem:[%s230 + $0x50] sm:$0xff]
        %v487 = vld [vmem:[%s230 + $0x58] sm:$0xff]
        %v488 = vld [vmem:[%s230 + $0x60] sm:$0xff]
        %v489 = vld [vmem:[%s230 + $0x68] sm:$0xff]
        %v490 = vld [vmem:[%s230 + $0x70] sm:$0xff]
        %v491 = vld [vmem:[%s230 + $0x78] sm:$0xff]
        %v492 = vld [vmem:[%s230 + $0x80] sm:$0xff]
        %v493 = vld [vmem:[%s230 + $0x88] sm:$0xff]
        %v494 = vld [vmem:[%s230 + $0x90] sm:$0xff]
        %v495 = vld [vmem:[%s230 + $0x98] sm:$0xff]
        %v496 = vld [vmem:[%s230 + $0xa0] sm:$0xff]
        %v497 = vld [vmem:[%s230 + $0xa8] sm:$0xff]
        %v498 = vld [vmem:[%s230 + $0xb0] sm:$0xff]
        %v499 = vld [vmem:[%s230 + $0xb8] sm:$0xff]
        %v500 = vld [vmem:[%s230 + $0xc0] sm:$0xff]
        %v501 = vld [vmem:[%s230 + $0xc8] sm:$0xff]
        %v502 = vld [vmem:[%s230 + $0xd0] sm:$0xff]
        %v503 = vld [vmem:[%s230 + $0xd8] sm:$0xff]
        %v504 = vld [vmem:[%s230 + $0xe0] sm:$0xff]
        %v505 = vld [vmem:[%s230 + $0xe8] sm:$0xff]
        %v506 = vld [vmem:[%s230 + $0xf0] sm:$0xff]
        %v507 = vld [vmem:[%s230 + $0xf8] sm:$0xff]
        %v508 = vld [vmem:[%s230 + $0x100] sm:$0xff]
        %v509 = vld [vmem:[%s230 + $0x108] sm:$0xff]
        %v510 = vld [vmem:[%s230 + $0x110] sm:$0xff]
        %v511 = vld [vmem:[%s230 + $0x118] sm:$0xff]
        %v512 = vld [vmem:[%s230 + $0x120] sm:$0xff]
        %v513 = vld [vmem:[%s230 + $0x128] sm:$0xff]
        %v514 = vld [vmem:[%s230 + $0x130] sm:$0xff]
        %v515 = vld [vmem:[%s230 + $0x138] sm:$0xff]
        %v516 = vld [vmem:[%s230 + $0x140] sm:$0xff]
        %v517 = vld [vmem:[%s230 + $0x148] sm:$0xff]
        %v518 = vld [vmem:[%s230 + $0x150] sm:$0xff]
        %v519 = vld [vmem:[%s230 + $0x158] sm:$0xff]
        %v520 = vld [vmem:[%s230 + $0x160] sm:$0xff]
        %v521 = vld [vmem:[%s230 + $0x168] sm:$0xff]
        %v522 = vld [vmem:[%s230 + $0x170] sm:$0xff]
        %v523 = vld [vmem:[%s230 + $0x178] sm:$0xff]
        %v524 = vld [vmem:[%s230 + $0x180] sm:$0xff]
        %v525 = vld [vmem:[%s230 + $0x188] sm:$0xff]
        %v526 = vld [vmem:[%s230 + $0x190] sm:$0xff]
        %v527 = vld [vmem:[%s230 + $0x198] sm:$0xff]
        %v528 = vld [vmem:[%s230 + $0x1a0] sm:$0xff]
        %v529 = vld [vmem:[%s230 + $0x1a8] sm:$0xff]
        %v530 = vld [vmem:[%s230 + $0x1b0] sm:$0xff]
        %v531 = vld [vmem:[%s230 + $0x1b8] sm:$0xff]
        %v532 = vld [vmem:[%s230 + $0x1c0] sm:$0xff]
        %v533 = vld [vmem:[%s230 + $0x1c8] sm:$0xff]
        %v534 = vld [vmem:[%s230 + $0x1d0] sm:$0xff]
        %v535 = vld [vmem:[%s230 + $0x1d8] sm:$0xff]
        %v536 = vld [vmem:[%s230 + $0x1e0] sm:$0xff]
        %v537 = vld [vmem:[%s230 + $0x1e8] sm:$0xff]
        %v538 = vld [vmem:[%s230 + $0x1f0] sm:$0xff]
        %v539 = vld [vmem:[%s230 + $0x1f8] sm:$0xff]
        %540 = vmatprep.subr.mxu0 %v477
        %541 = vmatpush1.msra.mxu0 %v476
        %542 = vmatprep.subr.mxu0 %v479
        %543 = vmatpush1.msra.mxu0 %v478
        %544 = vmatprep.subr.mxu0 %v481
        %545 = vmatpush1.msra.mxu0 %v480
        %546 = vmatprep.subr.mxu0 %v483
        %547 = vmatpush1.msra.mxu0 %v482
        %548 = vmatprep.subr.mxu0 %v485
        %549 = vmatpush1.msra.mxu0 %v484
        %550 = vmatprep.subr.mxu0 %v487
        %551 = vmatpush1.msra.mxu0 %v486
        %552 = vmatprep.subr.mxu0 %v489
        %553 = vmatpush1.msra.mxu0 %v488
        %554 = vmatprep.subr.mxu0 %v491
        %555 = vmatpush1.msra.mxu0 %v490
        %556 = vmatprep.subr.mxu0 %v493
        %557 = vmatpush1.msra.mxu0 %v492
        %558 = vmatprep.subr.mxu0 %v495
        %559 = vmatpush1.msra.mxu0 %v494
        %560 = vmatprep.subr.mxu0 %v497
        %561 = vmatpush1.msra.mxu0 %v496
        %562 = vmatprep.subr.mxu0 %v499
        %563 = vmatpush1.msra.mxu0 %v498
        %564 = vmatprep.subr.mxu0 %v501
        %565 = vmatpush1.msra.mxu0 %v500
        %566 = vmatprep.subr.mxu0 %v503
        %567 = vmatpush1.msra.mxu0 %v502
        %568 = vmatprep.subr.mxu0 %v505
        %569 = vmatpush1.msra.mxu0 %v504
        %570 = vmatprep.subr.mxu0 %v507
        %571 = vmatpush1.msra.mxu0 %v506
        %572 = vmatprep.subr.mxu0 %v509
        %573 = vmatpush1.msra.mxu0 %v508
        %574 = vmatprep.subr.mxu0 %v511
        %575 = vmatpush1.msra.mxu0 %v510
        %576 = vmatprep.subr.mxu0 %v513
        %577 = vmatpush1.msra.mxu0 %v512
        %578 = vmatprep.subr.mxu0 %v515
        %579 = vmatpush1.msra.mxu0 %v514
        %580 = vmatprep.subr.mxu0 %v517
        %581 = vmatpush1.msra.mxu0 %v516
        %582 = vmatprep.subr.mxu0 %v519
        %583 = vmatpush1.msra.mxu0 %v518
        %584 = vmatprep.subr.mxu0 %v521
        %585 = vmatpush1.msra.mxu0 %v520
        %586 = vmatprep.subr.mxu0 %v523
        %587 = vmatpush1.msra.mxu0 %v522
        %588 = vmatprep.subr.mxu0 %v525
        %589 = vmatpush1.msra.mxu0 %v524
        %590 = vmatprep.subr.mxu0 %v527
        %591 = vmatpush1.msra.mxu0 %v526
        %592 = vmatprep.subr.mxu0 %v529
        %593 = vmatpush1.msra.mxu0 %v528
        %594 = vmatprep.subr.mxu0 %v531
        %595 = vmatpush1.msra.mxu0 %v530
        %596 = vmatprep.subr.mxu0 %v533
        %597 = vmatpush1.msra.mxu0 %v532
        %598 = vmatprep.subr.mxu0 %v535
        %599 = vmatpush1.msra.mxu0 %v534
        %600 = vmatprep.subr.mxu0 %v537
        %601 = vmatpush1.msra.mxu0 %v536
        %602 = vmatprep.subr.mxu0 %v539
        %603 = vmatpush1.msra.mxu0 %v538
        %604 = vmatprep.mubr.f32.mxu0 %v413
        %605 = vmatmul.mubr.f32.gmra.mrb[0].mxu0 %v412
        %v606 = vpop.f32.mrb[0].mxu0
        %v607 = vadd.f32 0.0, %v606
        %v608 = vpop.f32.mrb[0].mxu0
        %v609 = vadd.f32 0.0, %v608
        %610 = vmatprep.mubr.f32.mxu0 %v415
        %611 = vmatmul.mubr.f32.gmra.mrb[0].mxu0 %v414
        %v612 = vpop.f32.mrb[0].mxu0
        %v613 = vadd.f32 0.0, %v612
        %v614 = vpop.f32.mrb[0].mxu0
        %v615 = vadd.f32 0.0, %v614
        %616 = vmatprep.mubr.f32.mxu0 %v417
        %617 = vmatmul.mubr.f32.gmra.mrb[0].mxu0 %v416
        %v618 = vpop.f32.mrb[0].mxu0
        %v619 = vadd.f32 0.0, %v618
        %v620 = vpop.f32.mrb[0].mxu0
        %v621 = vadd.f32 0.0, %v620
        %622 = vmatprep.mubr.f32.mxu0 %v419
        %623 = vmatmul.mubr.f32.gmra.mrb[0].mxu0 %v418
        %v624 = vpop.f32.mrb[0].mxu0
        %v625 = vadd.f32 0.0, %v624
        %v626 = vpop.f32.mrb[0].mxu0
        %v627 = vadd.f32 0.0, %v626
        %628 = vmatprep.mubr.f32.mxu0 %v421
        %629 = vmatmul.mubr.f32.gmra.mrb[0].mxu0 %v420
        %v630 = vpop.f32.mrb[0].mxu0
        %v631 = vadd.f32 0.0, %v630
        %v632 = vpop.f32.mrb[0].mxu0
        %v633 = vadd.f32 0.0, %v632
        %634 = vmatprep.mubr.f32.mxu0 %v423
        %635 = vmatmul.mubr.f32.gmra.mrb[0].mxu0 %v422
        %v636 = vpop.f32.mrb[0].mxu0
        %v637 = vadd.f32 0.0, %v636
        %v638 = vpop.f32.mrb[0].mxu0
        %v639 = vadd.f32 0.0, %v638
        %640 = vmatprep.mubr.f32.mxu0 %v425
        %641 = vmatmul.mubr.f32.gmra.mrb[0].mxu0 %v424
        %v642 = vpop.f32.mrb[0].mxu0
        %v643 = vadd.f32 0.0, %v642
        %v644 = vpop.f32.mrb[0].mxu0
        %v645 = vadd.f32 0.0, %v644
        %646 = vmatprep.mubr.f32.mxu0 %v427
        %647 = vmatmul.mubr.f32.gmra.mrb[0].mxu0 %v426
        %v648 = vpop.f32.mrb[0].mxu0
        %v649 = vadd.f32 0.0, %v648
        %v650 = vpop.f32.mrb[0].mxu0
        %v651 = vadd.f32 0.0, %v650
        %652 = vmatprep.mubr.f32.mxu0 %v429
        %653 = vmatmul.mubr.f32.gmra.mrb[0].mxu0 %v428
        %v654 = vpop.f32.mrb[0].mxu0
        %v655 = vadd.f32 0.0, %v654
        %v656 = vpop.f32.mrb[0].mxu0
        %v657 = vadd.f32 0.0, %v656
        %658 = vmatprep.mubr.f32.mxu0 %v431
        %659 = vmatmul.mubr.f32.gmra.mrb[0].mxu0 %v430
        %v660 = vpop.f32.mrb[0].mxu0
        %v661 = vadd.f32 0.0, %v660
        %v662 = vpop.f32.mrb[0].mxu0
        %v663 = vadd.f32 0.0, %v662
        %664 = vmatprep.mubr.f32.mxu0 %v433
        %665 = vmatmul.mubr.f32.gmra.mrb[0].mxu0 %v432
        %v666 = vpop.f32.mrb[0].mxu0
        %v667 = vadd.f32 0.0, %v666
        %v668 = vpop.f32.mrb[0].mxu0
        %v669 = vadd.f32 0.0, %v668
        %670 = vmatprep.mubr.f32.mxu0 %v435
        %671 = vmatmul.mubr.f32.gmra.mrb[0].mxu0 %v434
        %v672 = vpop.f32.mrb[0].mxu0
        %v673 = vadd.f32 0.0, %v672
        %v674 = vpop.f32.mrb[0].mxu0
        %v675 = vadd.f32 0.0, %v674
        %676 = vmatprep.mubr.f32.mxu0 %v437
        %677 = vmatmul.mubr.f32.gmra.mrb[0].mxu0 %v436
        %v678 = vpop.f32.mrb[0].mxu0
        %v679 = vadd.f32 0.0, %v678
        %v680 = vpop.f32.mrb[0].mxu0
        %v681 = vadd.f32 0.0, %v680
        %682 = vmatprep.mubr.f32.mxu0 %v439
        %683 = vmatmul.mubr.f32.gmra.mrb[0].mxu0 %v438
        %v684 = vpop.f32.mrb[0].mxu0
        %v685 = vadd.f32 0.0, %v684
        %v686 = vpop.f32.mrb[0].mxu0
        %v687 = vadd.f32 0.0, %v686
        %688 = vmatprep.mubr.f32.mxu0 %v441
        %689 = vmatmul.mubr.f32.gmra.mrb[0].mxu0 %v440
        %v690 = vpop.f32.mrb[0].mxu0
        %v691 = vadd.f32 0.0, %v690
        %v692 = vpop.f32.mrb[0].mxu0
        %v693 = vadd.f32 0.0, %v692
        %694 = vmatprep.mubr.f32.mxu0 %v443
        %695 = vmatmul.mubr.f32.gmra.mrb[0].mxu0 %v442
        %v696 = vpop.f32.mrb[0].mxu0
        %v697 = vadd.f32 0.0, %v696
        %v698 = vpop.f32.mrb[0].mxu0
        %v699 = vadd.f32 0.0, %v698
        %700 = vmatprep.mubr.f32.mxu0 %v445
        %701 = vmatmul.mubr.f32.gmra.mrb[0].mxu0 %v444
        %v702 = vpop.f32.mrb[0].mxu0
        %v703 = vadd.f32 0.0, %v702
        %v704 = vpop.f32.mrb[0].mxu0
        %v705 = vadd.f32 0.0, %v704
        %706 = vmatprep.mubr.f32.mxu0 %v447
        %707 = vmatmul.mubr.f32.gmra.mrb[0].mxu0 %v446
        %v708 = vpop.f32.mrb[0].mxu0
        %v709 = vadd.f32 0.0, %v708
        %v710 = vpop.f32.mrb[0].mxu0
        %v711 = vadd.f32 0.0, %v710
        %712 = vmatprep.mubr.f32.mxu0 %v449
        %713 = vmatmul.mubr.f32.gmra.mrb[0].mxu0 %v448
        %v714 = vpop.f32.mrb[0].mxu0
        %v715 = vadd.f32 0.0, %v714
        %v716 = vpop.f32.mrb[0].mxu0
        %v717 = vadd.f32 0.0, %v716
        %718 = vmatprep.mubr.f32.mxu0 %v451
        %719 = vmatmul.mubr.f32.gmra.mrb[0].mxu0 %v450
        %v720 = vpop.f32.mrb[0].mxu0
        %v721 = vadd.f32 0.0, %v720
        %v722 = vpop.f32.mrb[0].mxu0
        %v723 = vadd.f32 0.0, %v722
        %724 = vmatprep.mubr.f32.mxu0 %v453
        %725 = vmatmul.mubr.f32.gmra.mrb[0].mxu0 %v452
        %v726 = vpop.f32.mrb[0].mxu0
        %v727 = vadd.f32 0.0, %v726
        %v728 = vpop.f32.mrb[0].mxu0
        %v729 = vadd.f32 0.0, %v728
        %730 = vmatprep.mubr.f32.mxu0 %v455
        %731 = vmatmul.mubr.f32.gmra.mrb[0].mxu0 %v454
        %v732 = vpop.f32.mrb[0].mxu0
        %v733 = vadd.f32 0.0, %v732
        %v734 = vpop.f32.mrb[0].mxu0
        %v735 = vadd.f32 0.0, %v734
        %736 = vmatprep.mubr.f32.mxu0 %v457
        %737 = vmatmul.mubr.f32.gmra.mrb[0].mxu0 %v456
        %v738 = vpop.f32.mrb[0].mxu0
        %v739 = vadd.f32 0.0, %v738
        %v740 = vpop.f32.mrb[0].mxu0
        %v741 = vadd.f32 0.0, %v740
        %742 = vmatprep.mubr.f32.mxu0 %v459
        %743 = vmatmul.mubr.f32.gmra.mrb[0].mxu0 %v458
        %v744 = vpop.f32.mrb[0].mxu0
        %v745 = vadd.f32 0.0, %v744
        %v746 = vpop.f32.mrb[0].mxu0
        %v747 = vadd.f32 0.0, %v746
        %748 = vmatprep.mubr.f32.mxu0 %v461
        %749 = vmatmul.mubr.f32.gmra.mrb[0].mxu0 %v460
        %v750 = vpop.f32.mrb[0].mxu0
        %v751 = vadd.f32 0.0, %v750
        %v752 = vpop.f32.mrb[0].mxu0
        %v753 = vadd.f32 0.0, %v752
        %754 = vmatprep.mubr.f32.mxu0 %v463
        %755 = vmatmul.mubr.f32.gmra.mrb[0].mxu0 %v462
        %v756 = vpop.f32.mrb[0].mxu0
        %v757 = vadd.f32 0.0, %v756
        %v758 = vpop.f32.mrb[0].mxu0
        %v759 = vadd.f32 0.0, %v758
        %760 = vmatprep.mubr.f32.mxu0 %v465
        %761 = vmatmul.mubr.f32.gmra.mrb[0].mxu0 %v464
        %v762 = vpop.f32.mrb[0].mxu0
        %v763 = vadd.f32 0.0, %v762
        %v764 = vpop.f32.mrb[0].mxu0
        %v765 = vadd.f32 0.0, %v764
        %766 = vmatprep.mubr.f32.mxu0 %v467
        %767 = vmatmul.mubr.f32.gmra.mrb[0].mxu0 %v466
        %v768 = vpop.f32.mrb[0].mxu0
        %v769 = vadd.f32 0.0, %v768
        %v770 = vpop.f32.mrb[0].mxu0
        %v771 = vadd.f32 0.0, %v770
        %772 = vmatprep.mubr.f32.mxu0 %v469
        %773 = vmatmul.mubr.f32.gmra.mrb[0].mxu0 %v468
        %v774 = vpop.f32.mrb[0].mxu0
        %v775 = vadd.f32 0.0, %v774
        %v776 = vpop.f32.mrb[0].mxu0
        %v777 = vadd.f32 0.0, %v776
        %778 = vmatprep.mubr.f32.mxu0 %v471
        %779 = vmatmul.mubr.f32.gmra.mrb[0].mxu0 %v470
        %v780 = vpop.f32.mrb[0].mxu0
        %v781 = vadd.f32 0.0, %v780
        %v782 = vpop.f32.mrb[0].mxu0
        %v783 = vadd.f32 0.0, %v782
        %784 = vmatprep.mubr.f32.mxu0 %v473
        %785 = vmatmul.mubr.f32.gmra.mrb[0].mxu0 %v472
        %v786 = vpop.f32.mrb[0].mxu0
        %v787 = vadd.f32 0.0, %v786
        %v788 = vpop.f32.mrb[0].mxu0
        %v789 = vadd.f32 0.0, %v788
        %790 = vmatprep.mubr.f32.mxu0 %v475
        %791 = vmatmul.mubr.f32.gmra.mrb[0].mxu0 %v474
        %v792 = vpop.f32.mrb[0].mxu0
        %v793 = vadd.f32 0.0, %v792
        %v794 = vpop.f32.mrb[0].mxu0
        %v795 = vadd.f32 0.0, %v794
        %796 = vdwg.mxu0
        %v797 = vadd.f32 %v348, %v607
        %v798 = vadd.f32 %v349, %v609
        %v799 = vadd.f32 %v350, %v613
        %v800 = vadd.f32 %v351, %v615
        %v801 = vadd.f32 %v352, %v619
        %v802 = vadd.f32 %v353, %v621
        %v803 = vadd.f32 %v354, %v625
        %v804 = vadd.f32 %v355, %v627
        %v805 = vadd.f32 %v356, %v631
        %v806 = vadd.f32 %v357, %v633
        %v807 = vadd.f32 %v358, %v637
        %v808 = vadd.f32 %v359, %v639
        %v809 = vadd.f32 %v360, %v643
        %v810 = vadd.f32 %v361, %v645
        %v811 = vadd.f32 %v362, %v649
        %v812 = vadd.f32 %v363, %v651
        %v813 = vadd.f32 %v364, %v655
        %v814 = vadd.f32 %v365, %v657
        %v815 = vadd.f32 %v366, %v661
        %v816 = vadd.f32 %v367, %v663
        %v817 = vadd.f32 %v368, %v667
        %v818 = vadd.f32 %v369, %v669
        %v819 = vadd.f32 %v370, %v673
        %v820 = vadd.f32 %v371, %v675
        %v821 = vadd.f32 %v372, %v679
        %v822 = vadd.f32 %v373, %v681
        %v823 = vadd.f32 %v374, %v685
        %v824 = vadd.f32 %v375, %v687
        %v825 = vadd.f32 %v376, %v691
        %v826 = vadd.f32 %v377, %v693
        %v827 = vadd.f32 %v378, %v697
        %v828 = vadd.f32 %v379, %v699
        %v829 = vadd.f32 %v380, %v703
        %v830 = vadd.f32 %v381, %v705
        %v831 = vadd.f32 %v382, %v709
        %v832 = vadd.f32 %v383, %v711
        %v833 = vadd.f32 %v384, %v715
        %v834 = vadd.f32 %v385, %v717
        %v835 = vadd.f32 %v386, %v721
        %v836 = vadd.f32 %v387, %v723
        %v837 = vadd.f32 %v388, %v727
        %v838 = vadd.f32 %v389, %v729
        %v839 = vadd.f32 %v390, %v733
        %v840 = vadd.f32 %v391, %v735
        %v841 = vadd.f32 %v392, %v739
        %v842 = vadd.f32 %v393, %v741
        %v843 = vadd.f32 %v394, %v745
        %v844 = vadd.f32 %v395, %v747
        %v845 = vadd.f32 %v396, %v751
        %v846 = vadd.f32 %v397, %v753
        %v847 = vadd.f32 %v398, %v757
        %v848 = vadd.f32 %v399, %v759
        %v849 = vadd.f32 %v400, %v763
        %v850 = vadd.f32 %v401, %v765
        %v851 = vadd.f32 %v402, %v769
        %v852 = vadd.f32 %v403, %v771
        %v853 = vadd.f32 %v404, %v775
        %v854 = vadd.f32 %v405, %v777
        %v855 = vadd.f32 %v406, %v781
        %v856 = vadd.f32 %v407, %v783
        %v857 = vadd.f32 %v408, %v787
        %v858 = vadd.f32 %v409, %v789
        %v859 = vadd.f32 %v410, %v793
        %v860 = vadd.f32 %v411, %v795
        %861 = vst [vmem:[#allocation2] sm:$0xff] %v797
        %862 = vst [vmem:[#allocation2 + $0x8] sm:$0xff] %v798
        %863 = vst [vmem:[#allocation2 + $0x10] sm:$0xff] %v799
        %864 = vst [vmem:[#allocation2 + $0x18] sm:$0xff] %v800
        %865 = vst [vmem:[#allocation2 + $0x20] sm:$0xff] %v801
        %866 = vst [vmem:[#allocation2 + $0x28] sm:$0xff] %v802
        %867 = vst [vmem:[#allocation2 + $0x30] sm:$0xff] %v803
        %868 = vst [vmem:[#allocation2 + $0x38] sm:$0xff] %v804
        %869 = vst [vmem:[#allocation2 + $0x40] sm:$0xff] %v805
        %870 = vst [vmem:[#allocation2 + $0x48] sm:$0xff] %v806
        %871 = vst [vmem:[#allocation2 + $0x50] sm:$0xff] %v807
        %872 = vst [vmem:[#allocation2 + $0x58] sm:$0xff] %v808
        %873 = vst [vmem:[#allocation2 + $0x60] sm:$0xff] %v809
        %874 = vst [vmem:[#allocation2 + $0x68] sm:$0xff] %v810
        %875 = vst [vmem:[#allocation2 + $0x70] sm:$0xff] %v811
        %876 = vst [vmem:[#allocation2 + $0x78] sm:$0xff] %v812
        %877 = vst [vmem:[#allocation2 + $0x80] sm:$0xff] %v813
        %878 = vst [vmem:[#allocation2 + $0x88] sm:$0xff] %v814
        %879 = vst [vmem:[#allocation2 + $0x90] sm:$0xff] %v815
        %880 = vst [vmem:[#allocation2 + $0x98] sm:$0xff] %v816
        %881 = vst [vmem:[#allocation2 + $0xa0] sm:$0xff] %v817
        %882 = vst [vmem:[#allocation2 + $0xa8] sm:$0xff] %v818
        %883 = vst [vmem:[#allocation2 + $0xb0] sm:$0xff] %v819
        %884 = vst [vmem:[#allocation2 + $0xb8] sm:$0xff] %v820
        %885 = vst [vmem:[#allocation2 + $0xc0] sm:$0xff] %v821
        %886 = vst [vmem:[#allocation2 + $0xc8] sm:$0xff] %v822
        %887 = vst [vmem:[#allocation2 + $0xd0] sm:$0xff] %v823
        %888 = vst [vmem:[#allocation2 + $0xd8] sm:$0xff] %v824
        %889 = vst [vmem:[#allocation2 + $0xe0] sm:$0xff] %v825
        %890 = vst [vmem:[#allocation2 + $0xe8] sm:$0xff] %v826
        %891 = vst [vmem:[#allocation2 + $0xf0] sm:$0xff] %v827
        %892 = vst [vmem:[#allocation2 + $0xf8] sm:$0xff] %v828
        %893 = vst [vmem:[#allocation2 + $0x100] sm:$0xff] %v829
        %894 = vst [vmem:[#allocation2 + $0x108] sm:$0xff] %v830
        %895 = vst [vmem:[#allocation2 + $0x110] sm:$0xff] %v831
        %896 = vst [vmem:[#allocation2 + $0x118] sm:$0xff] %v832
        %897 = vst [vmem:[#allocation2 + $0x120] sm:$0xff] %v833
        %898 = vst [vmem:[#allocation2 + $0x128] sm:$0xff] %v834
        %899 = vst [vmem:[#allocation2 + $0x130] sm:$0xff] %v835
        %900 = vst [vmem:[#allocation2 + $0x138] sm:$0xff] %v836
        %901 = vst [vmem:[#allocation2 + $0x140] sm:$0xff] %v837
        %902 = vst [vmem:[#allocation2 + $0x148] sm:$0xff] %v838
        %903 = vst [vmem:[#allocation2 + $0x150] sm:$0xff] %v839
        %904 = vst [vmem:[#allocation2 + $0x158] sm:$0xff] %v840
        %905 = vst [vmem:[#allocation2 + $0x160] sm:$0xff] %v841
        %906 = vst [vmem:[#allocation2 + $0x168] sm:$0xff] %v842
        %907 = vst [vmem:[#allocation2 + $0x170] sm:$0xff] %v843
        %908 = vst [vmem:[#allocation2 + $0x178] sm:$0xff] %v844
        %909 = vst [vmem:[#allocation2 + $0x180] sm:$0xff] %v845
        %910 = vst [vmem:[#allocation2 + $0x188] sm:$0xff] %v846
        %911 = vst [vmem:[#allocation2 + $0x190] sm:$0xff] %v847
        %912 = vst [vmem:[#allocation2 + $0x198] sm:$0xff] %v848
        %913 = vst [vmem:[#allocation2 + $0x1a0] sm:$0xff] %v849
        %914 = vst [vmem:[#allocation2 + $0x1a8] sm:$0xff] %v850
        %915 = vst [vmem:[#allocation2 + $0x1b0] sm:$0xff] %v851
        %916 = vst [vmem:[#allocation2 + $0x1b8] sm:$0xff] %v852
        %917 = vst [vmem:[#allocation2 + $0x1c0] sm:$0xff] %v853
        %918 = vst [vmem:[#allocation2 + $0x1c8] sm:$0xff] %v854
        %919 = vst [vmem:[#allocation2 + $0x1d0] sm:$0xff] %v855
        %920 = vst [vmem:[#allocation2 + $0x1d8] sm:$0xff] %v856
        %921 = vst [vmem:[#allocation2 + $0x1e0] sm:$0xff] %v857
        %922 = vst [vmem:[#allocation2 + $0x1e8] sm:$0xff] %v858
        %923 = vst [vmem:[#allocation2 + $0x1f0] sm:$0xff] %v859
        %924 = vst [vmem:[#allocation2 + $0x1f8] sm:$0xff] %v860
        // Predicated region
        $region45: #{tpu_custom_call.1} parent=31 // pred_check
          %p925 = pneg %p268
        $region46: #{tpu_custom_call.1} parent=31 // pred_check_branch
          %927 = sbr.rel (%p925) target = $region48
        $region47: #{tpu_custom_call.1} parent=31 // pred_region
          %v928 = vld [vmem:[#allocation2] sm:$0xff]
          %v929 = vld [vmem:[#allocation2 + $0x8] sm:$0xff]
          %v930 = vld [vmem:[#allocation2 + $0x10] sm:$0xff]
          %v931 = vld [vmem:[#allocation2 + $0x18] sm:$0xff]
          %v932 = vld [vmem:[#allocation2 + $0x20] sm:$0xff]
          %v933 = vld [vmem:[#allocation2 + $0x28] sm:$0xff]
          %v934 = vld [vmem:[#allocation2 + $0x30] sm:$0xff]
          %v935 = vld [vmem:[#allocation2 + $0x38] sm:$0xff]
          %v936 = vld [vmem:[#allocation2 + $0x40] sm:$0xff]
          %v937 = vld [vmem:[#allocation2 + $0x48] sm:$0xff]
          %v938 = vld [vmem:[#allocation2 + $0x50] sm:$0xff]
          %v939 = vld [vmem:[#allocation2 + $0x58] sm:$0xff]
          %v940 = vld [vmem:[#allocation2 + $0x60] sm:$0xff]
          %v941 = vld [vmem:[#allocation2 + $0x68] sm:$0xff]
          %v942 = vld [vmem:[#allocation2 + $0x70] sm:$0xff]
          %v943 = vld [vmem:[#allocation2 + $0x78] sm:$0xff]
          %v944 = vld [vmem:[#allocation2 + $0x80] sm:$0xff]
          %v945 = vld [vmem:[#allocation2 + $0x88] sm:$0xff]
          %v946 = vld [vmem:[#allocation2 + $0x90] sm:$0xff]
          %v947 = vld [vmem:[#allocation2 + $0x98] sm:$0xff]
          %v948 = vld [vmem:[#allocation2 + $0xa0] sm:$0xff]
          %v949 = vld [vmem:[#allocation2 + $0xa8] sm:$0xff]
          %v950 = vld [vmem:[#allocation2 + $0xb0] sm:$0xff]
          %v951 = vld [vmem:[#allocation2 + $0xb8] sm:$0xff]
          %v952 = vld [vmem:[#allocation2 + $0xc0] sm:$0xff]
          %v953 = vld [vmem:[#allocation2 + $0xc8] sm:$0xff]
          %v954 = vld [vmem:[#allocation2 + $0xd0] sm:$0xff]
          %v955 = vld [vmem:[#allocation2 + $0xd8] sm:$0xff]
          %v956 = vld [vmem:[#allocation2 + $0xe0] sm:$0xff]
          %v957 = vld [vmem:[#allocation2 + $0xe8] sm:$0xff]
          %v958 = vld [vmem:[#allocation2 + $0xf0] sm:$0xff]
          %v959 = vld [vmem:[#allocation2 + $0xf8] sm:$0xff]
          %v960 = vld [vmem:[#allocation2 + $0x100] sm:$0xff]
          %v961 = vld [vmem:[#allocation2 + $0x108] sm:$0xff]
          %v962 = vld [vmem:[#allocation2 + $0x110] sm:$0xff]
          %v963 = vld [vmem:[#allocation2 + $0x118] sm:$0xff]
          %v964 = vld [vmem:[#allocation2 + $0x120] sm:$0xff]
          %v965 = vld [vmem:[#allocation2 + $0x128] sm:$0xff]
          %v966 = vld [vmem:[#allocation2 + $0x130] sm:$0xff]
          %v967 = vld [vmem:[#allocation2 + $0x138] sm:$0xff]
          %v968 = vld [vmem:[#allocation2 + $0x140] sm:$0xff]
          %v969 = vld [vmem:[#allocation2 + $0x148] sm:$0xff]
          %v970 = vld [vmem:[#allocation2 + $0x150] sm:$0xff]
          %v971 = vld [vmem:[#allocation2 + $0x158] sm:$0xff]
          %v972 = vld [vmem:[#allocation2 + $0x160] sm:$0xff]
          %v973 = vld [vmem:[#allocation2 + $0x168] sm:$0xff]
          %v974 = vld [vmem:[#allocation2 + $0x170] sm:$0xff]
          %v975 = vld [vmem:[#allocation2 + $0x178] sm:$0xff]
          %v976 = vld [vmem:[#allocation2 + $0x180] sm:$0xff]
          %v977 = vld [vmem:[#allocation2 + $0x188] sm:$0xff]
          %v978 = vld [vmem:[#allocation2 + $0x190] sm:$0xff]
          %v979 = vld [vmem:[#allocation2 + $0x198] sm:$0xff]
          %v980 = vld [vmem:[#allocation2 + $0x1a0] sm:$0xff]
          %v981 = vld [vmem:[#allocation2 + $0x1a8] sm:$0xff]
          %v982 = vld [vmem:[#allocation2 + $0x1b0] sm:$0xff]
          %v983 = vld [vmem:[#allocation2 + $0x1b8] sm:$0xff]
          %v984 = vld [vmem:[#allocation2 + $0x1c0] sm:$0xff]
          %v985 = vld [vmem:[#allocation2 + $0x1c8] sm:$0xff]
          %v986 = vld [vmem:[#allocation2 + $0x1d0] sm:$0xff]
          %v987 = vld [vmem:[#allocation2 + $0x1d8] sm:$0xff]
          %v988 = vld [vmem:[#allocation2 + $0x1e0] sm:$0xff]
          %v989 = vld [vmem:[#allocation2 + $0x1e8] sm:$0xff]
          %v990 = vld [vmem:[#allocation2 + $0x1f0] sm:$0xff]
          %v991 = vld [vmem:[#allocation2 + $0x1f8] sm:$0xff]
          %992 = vst [vmem:[%s256] sm:$0xff] %v928
          %993 = vst [vmem:[%s256 + $0x8] sm:$0xff] %v929
          %994 = vst [vmem:[%s256 + $0x10] sm:$0xff] %v930
          %995 = vst [vmem:[%s256 + $0x18] sm:$0xff] %v931
          %996 = vst [vmem:[%s256 + $0x20] sm:$0xff] %v932
          %997 = vst [vmem:[%s256 + $0x28] sm:$0xff] %v933
          %998 = vst [vmem:[%s256 + $0x30] sm:$0xff] %v934
          %999 = vst [vmem:[%s256 + $0x38] sm:$0xff] %v935
          %1000 = vst [vmem:[%s256 + $0x40] sm:$0xff] %v936
          %1001 = vst [vmem:[%s256 + $0x48] sm:$0xff] %v937
          %1002 = vst [vmem:[%s256 + $0x50] sm:$0xff] %v938
          %1003 = vst [vmem:[%s256 + $0x58] sm:$0xff] %v939
          %1004 = vst [vmem:[%s256 + $0x60] sm:$0xff] %v940
          %1005 = vst [vmem:[%s256 + $0x68] sm:$0xff] %v941
          %1006 = vst [vmem:[%s256 + $0x70] sm:$0xff] %v942
          %1007 = vst [vmem:[%s256 + $0x78] sm:$0xff] %v943
          %1008 = vst [vmem:[%s256 + $0x80] sm:$0xff] %v944
          %1009 = vst [vmem:[%s256 + $0x88] sm:$0xff] %v945
          %1010 = vst [vmem:[%s256 + $0x90] sm:$0xff] %v946
          %1011 = vst [vmem:[%s256 + $0x98] sm:$0xff] %v947
          %1012 = vst [vmem:[%s256 + $0xa0] sm:$0xff] %v948
          %1013 = vst [vmem:[%s256 + $0xa8] sm:$0xff] %v949
          %1014 = vst [vmem:[%s256 + $0xb0] sm:$0xff] %v950
          %1015 = vst [vmem:[%s256 + $0xb8] sm:$0xff] %v951
          %1016 = vst [vmem:[%s256 + $0xc0] sm:$0xff] %v952
          %1017 = vst [vmem:[%s256 + $0xc8] sm:$0xff] %v953
          %1018 = vst [vmem:[%s256 + $0xd0] sm:$0xff] %v954
          %1019 = vst [vmem:[%s256 + $0xd8] sm:$0xff] %v955
          %1020 = vst [vmem:[%s256 + $0xe0] sm:$0xff] %v956
          %1021 = vst [vmem:[%s256 + $0xe8] sm:$0xff] %v957
          %1022 = vst [vmem:[%s256 + $0xf0] sm:$0xff] %v958
          %1023 = vst [vmem:[%s256 + $0xf8] sm:$0xff] %v959
          %1024 = vst [vmem:[%s256 + $0x100] sm:$0xff] %v960
          %1025 = vst [vmem:[%s256 + $0x108] sm:$0xff] %v961
          %1026 = vst [vmem:[%s256 + $0x110] sm:$0xff] %v962
          %1027 = vst [vmem:[%s256 + $0x118] sm:$0xff] %v963
          %1028 = vst [vmem:[%s256 + $0x120] sm:$0xff] %v964
          %1029 = vst [vmem:[%s256 + $0x128] sm:$0xff] %v965
          %1030 = vst [vmem:[%s256 + $0x130] sm:$0xff] %v966
          %1031 = vst [vmem:[%s256 + $0x138] sm:$0xff] %v967
          %1032 = vst [vmem:[%s256 + $0x140] sm:$0xff] %v968
          %1033 = vst [vmem:[%s256 + $0x148] sm:$0xff] %v969
          %1034 = vst [vmem:[%s256 + $0x150] sm:$0xff] %v970
          %1035 = vst [vmem:[%s256 + $0x158] sm:$0xff] %v971
          %1036 = vst [vmem:[%s256 + $0x160] sm:$0xff] %v972
          %1037 = vst [vmem:[%s256 + $0x168] sm:$0xff] %v973
          %1038 = vst [vmem:[%s256 + $0x170] sm:$0xff] %v974
          %1039 = vst [vmem:[%s256 + $0x178] sm:$0xff] %v975
          %1040 = vst [vmem:[%s256 + $0x180] sm:$0xff] %v976
          %1041 = vst [vmem:[%s256 + $0x188] sm:$0xff] %v977
          %1042 = vst [vmem:[%s256 + $0x190] sm:$0xff] %v978
          %1043 = vst [vmem:[%s256 + $0x198] sm:$0xff] %v979
          %1044 = vst [vmem:[%s256 + $0x1a0] sm:$0xff] %v980
          %1045 = vst [vmem:[%s256 + $0x1a8] sm:$0xff] %v981
          %1046 = vst [vmem:[%s256 + $0x1b0] sm:$0xff] %v982
          %1047 = vst [vmem:[%s256 + $0x1b8] sm:$0xff] %v983
          %1048 = vst [vmem:[%s256 + $0x1c0] sm:$0xff] %v984
          %1049 = vst [vmem:[%s256 + $0x1c8] sm:$0xff] %v985
          %1050 = vst [vmem:[%s256 + $0x1d0] sm:$0xff] %v986
          %1051 = vst [vmem:[%s256 + $0x1d8] sm:$0xff] %v987
          %1052 = vst [vmem:[%s256 + $0x1e0] sm:$0xff] %v988
          %1053 = vst [vmem:[%s256 + $0x1e8] sm:$0xff] %v989
          %1054 = vst [vmem:[%s256 + $0x1f0] sm:$0xff] %v990
          %1055 = vst [vmem:[%s256 + $0x1f8] sm:$0xff] %v991
        $region48: #{tpu_custom_call.1} parent=31 // pred_fallthru
          _
        %s1056 = sand.u32 %s132, 1
        %s1057 = scalar_lea.sflag [#allocation5], %s1056
        %s1058 = sand.u32 %s132, 1
        %s1059 = smul.addr %s1058, 512
        %s1060 = scalar_lea.vmem [#allocation8], %s1059
        // Predicated region
        $region49: #{tpu_custom_call.1} parent=31 // pred_check
          %p1061 = pneg %p142
        $region50: #{tpu_custom_call.1} parent=31 // pred_check_branch
          %1063 = sbr.rel (%p1061) target = $region52
        $region51: #{tpu_custom_call.1} parent=31 // pred_region
          %s1064 = smul.u32 32, %s26
          %s1065 = smul.u32 2, %s27
          %s1067 = ssub.s32 8192, 8192
          %1068 = vsyncadd %s1057, %s1067
          %s1069 = smul.addr %s1064, 6
          %s1070 = sadd.s32 %s1065, %s1069
          %s1071 = smul.addr %s1070, 128
          %s1072 = scalar_lea.hbm %s3, %s1071
          %s1073 = sshll.u32 %s1060, 4
          %s1074 = int_to_ptr.vmem [resolvable:$true] %s1073
          %1079 = dma.vmem_to_hbm [thread:$0]  %s1074, 8192, %s1072, %s1057, 256, 768, 16
        $region52: #{tpu_custom_call.1} parent=31 // pred_fallthru
          _
      $region32: #{tpu_custom_call.1} parent=5 // pred_fallthru
        _
      %p1080 = scmp.le.s32.totalorder 2, %s16
      // Predicated region
      $region53: #{tpu_custom_call.1} parent=5 // pred_check
        %p1081 = pneg %p1080
      $region54: #{tpu_custom_call.1} parent=5 // pred_check_branch
        %1083 = sbr.rel (%p1081) target = $region56
      $region55: #{tpu_custom_call.1} parent=5 // pred_region
        %s1084 = ssub.s32 %s16, 2
        // Predicated region
        $region57: #{tpu_custom_call.1} parent=55 // pred_check
          %p1085 = pneg %p148
        $region58: #{tpu_custom_call.1} parent=55 // pred_check_branch
          %1087 = sbr.rel (%p1085) target = $region60
        $region59: #{tpu_custom_call.1} parent=55 // pred_region
          %s1088 = sand.u32 %s133, 1
          %s1089 = scalar_lea.sflag [#allocation5], %s1088
          %s1090 = sand.u32 %s133, 1
          %s1091 = smul.addr %s1090, 512
          %s1092 = scalar_lea.vmem [#allocation8], %s1091
          %1093 = dma.done %s1089, 8192
        $region60: #{tpu_custom_call.1} parent=55 // pred_fallthru
          _
      $region56: #{tpu_custom_call.1} parent=5 // pred_fallthru
        _
    $region6: #{tpu_custom_call.1} parent=1 // loop_footer
      %s20 = sadd.s32 1, %s16
    $region7: #{tpu_custom_call.1} parent=1 // loop_footer_branch
      %15 = sbr.rel target = $region3
    $region8: #{tpu_custom_call.1} parent=1 // loop_exit
      _
    %1094 = vsyncpa [#allocation4], 1
    %s1095 = scalar_lea.sflag [#allocation4], 1
    %1096 = vsyncpa %s1095, 1
    %1097 = vsyncpa [#allocation7], 1
    %s1098 = scalar_lea.sflag [#allocation7], 1
    %1099 = vsyncpa %s1098, 1
    %1100 = vsyncpa [#allocation5], 1
    %s1101 = scalar_lea.sflag [#allocation5], 1
    %1102 = vsyncpa %s1101, 1

</llo_original>
